<compile_context>
chip_gen: v7x
topology: tpu7x:2x2x1
jax: 0.10.0
libtpu: 0.0.40
codegen_flags: <defaults>
</compile_context>

<pallas_src>
import functools
import math

import jax
import jax.numpy as jnp
from jax import lax
from jax.experimental import pallas as pl
from jax.experimental.pallas import tpu as pltpu

_LANE_WIDTH = 1024   # lane-dense last dim, large multiple of 128
_BLOCK_ROWS = 512    # 512 x 1024 f32 = 2 MiB per tile


def _round_up(a, b):
    return ((a + b - 1) // b) * b


def _hash_u32(x):
    """lowbias32: bijective, well-mixed uint32 -> uint32 hash (VPU-only ops)."""
    x = x ^ (x >> jnp.uint32(16))
    x = x * jnp.uint32(0x7FEB352D)
    x = x ^ (x >> jnp.uint32(15))
    x = x * jnp.uint32(0x846CA68B)
    x = x ^ (x >> jnp.uint32(16))
    return x


def _bits_to_open_unit(bits_u32):
    """uint32 bits -> float32 uniform strictly inside (0, 1) (log-safe)."""
    # Top 24 bits; route through int32 so the int->float convert is signed
    # (portable across Mosaic and the interpreter).
    v = (bits_u32 >> jnp.uint32(8)).astype(jnp.int32).astype(jnp.float32)
    return (v + jnp.float32(0.5)) * jnp.float32(1.0 / (1 << 24))


def _gaussian_noise_kernel(seed_ref, x_ref, o_ref, *, sigma, block_rows, width):
    half = block_rows // 2

    # Globally-unique per-element counters (include the grid step so every
    # tile draws different noise).
    row = lax.broadcasted_iota(jnp.int32, (half, width), 0)
    col = lax.broadcasted_iota(jnp.int32, (half, width), 1)
    base = pl.program_id(0) * (half * width)
    ctr = (base + row * width + col).astype(jnp.uint32)

    h = _hash_u32(ctr ^ seed_ref[0].astype(jnp.uint32))
    u1 = _bits_to_open_unit(_hash_u32(h ^ jnp.uint32(0x68BC21EB)))
    u2 = _bits_to_open_unit(_hash_u32(h ^ jnp.uint32(0x02E5BE93)))

    # Box-Muller, keeping BOTH outputs -> 2 transcendentals per element.
    r = jnp.sqrt(jnp.float32(-2.0) * jnp.log(u1))
    theta = jnp.float32(2.0 * math.pi) * u2
    z = jnp.concatenate([r * jnp.cos(theta), r * jnp.sin(theta)], axis=0)

    x = x_ref[...].astype(jnp.float32)
    out = x * (jnp.float32(1.0) + jnp.float32(sigma) * z)   # x + sigma*x*N(0,1)
    o_ref[...] = out.astype(o_ref.dtype)


def gaussian_noise(x, seed, *, sigma=0.1, training=True, is_relative_detach=True):
    """Forward pass of PyTorch GaussianNoise on an arbitrary-shape tensor."""
    # TODO(synk): is_relative_detach only affects autograd (stop-gradient on the
    # scale); the forward value is identical, so it is a no-op here.
    del is_relative_detach
    if not training or sigma == 0.0:
        return x

    orig_shape = x.shape
    total = int(x.size)

    width = _LANE_WIDTH
    rows = pl.cdiv(total, width)
    block_rows = min(_BLOCK_ROWS, _round_up(rows, 8))   # always even, >= 8
    rows_padded = _round_up(rows, block_rows)
    grid = rows_padded // block_rows

    flat = x.reshape(-1)
    pad = rows_padded * width - total
    if pad:
        flat = jnp.pad(flat, (0, pad))
    x2d = flat.reshape(rows_padded, width)

    seed_arr = jnp.asarray([seed], dtype=jnp.int32)

    kernel = functools.partial(
        _gaussian_noise_kernel,
        sigma=float(sigma),
        block_rows=block_rows,
        width=width,
    )

    out2d = pl.pallas_call(
        kernel,
        out_shape=jax.ShapeDtypeStruct((rows_padded, width), x.dtype),
        grid=(grid,),
        in_specs=[
            pl.BlockSpec(memory_space=pltpu.MemorySpace.SMEM),     # seed scalar
            pl.BlockSpec((block_rows, width), lambda i: (i, 0)),   # x tile
        ],
        out_specs=pl.BlockSpec((block_rows, width), lambda i: (i, 0)),
        compiler_params=pltpu.CompilerParams(
            dimension_semantics=("parallel",),
            vmem_limit_bytes=32 * 1024 * 1024,
        ),
    )(seed_arr, x2d)

    return out2d.reshape(-1)[:total].reshape(orig_shape)


if __name__ == "__main__":
    key = jax.random.PRNGKey(0)
    x = jax.random.normal(key, (2, 4, 16, 16), dtype=jnp.float32)  # NCHW

    out = gaussian_noise(x, seed=42, sigma=0.1, training=True)
    out = jax.block_until_ready(out)

    assert out.shape == x.shape and out.dtype == x.dtype
    assert bool(jnp.isfinite(out).all())

    # Implied noise z = (out - x) / (sigma * x) should be ~ N(0, 1).
    mask = jnp.abs(x) > 0.05
    z = jnp.where(mask, (out - x) / (0.1 * x), 0.0)
    n = jnp.sum(mask).astype(jnp.float32)
    z_mean = jnp.sum(z) / n
    z_var = jnp.sum(jnp.where(mask, (z - z_mean) ** 2, 0.0)) / n
    z_std = jnp.sqrt(z_var)
    assert abs(float(z_mean)) < 0.2, float(z_mean)
    assert 0.7 < float(z_std) < 1.3, float(z_std)

    # Eval mode (or sigma == 0) is the identity.
    out_eval = gaussian_noise(x, seed=42, sigma=0.1, training=False)
    assert bool(jnp.array_equal(out_eval, x))

    print("KERNEL_OK")
</pallas_src>

<mosaic_0001>
module attributes {stable_mosaic.version = 11 : i64} {
  func.func @_gaussian_noise_kernel(%arg0: i32, %arg1: memref<1xi32, #tpu.memory_space<smem>>, %arg2: memref<8x1024xf32, #tpu.memory_space<vmem>>, %arg3: memref<8x1024xf32, #tpu.memory_space<vmem>>) attributes {dimension_semantics = [#tpu.dimension_semantics<parallel>], iteration_bounds = array<i64: 1>, scalar_prefetch = 0 : i64, scratch_operands = 0 : i64, tpu.core_type = #tpu.core_type<tc>, window_params = [{transform_indices = @transform_0, window_bounds = array<i64: 1>}, {transform_indices = @transform_1, window_bounds = array<i64: 8, 1024>}, {transform_indices = @transform_2, window_bounds = array<i64: 8, 1024>}]} {
    %0 = tpu.iota {dimensions = array<i32: 0>} : vector<4x1024xi32>
    %1 = tpu.iota {dimensions = array<i32: 1>} : vector<4x1024xi32>
    %c4096_i32 = arith.constant 4096 : i32
    %2 = arith.muli %arg0, %c4096_i32 : i32
    %c1024_i32 = arith.constant 1024 : i32
    %3 = vector.broadcast %c1024_i32 : i32 to vector<4x1024xi32>
    %4 = arith.muli %0, %3 : vector<4x1024xi32>
    %5 = vector.broadcast %2 : i32 to vector<4x1024xi32>
    %6 = arith.addi %5, %4 : vector<4x1024xi32>
    %7 = arith.addi %6, %1 : vector<4x1024xi32>
    %c0 = arith.constant 0 : index
    %8 = memref.load %arg1[%c0] : memref<1xi32, #tpu.memory_space<smem>>
    %9 = vector.broadcast %8 : i32 to vector<4x1024xi32>
    %10 = arith.xori %7, %9 : vector<4x1024xi32>
    %c16_i32 = arith.constant 16 : i32
    %11 = vector.broadcast %c16_i32 : i32 to vector<4x1024xi32>
    %12 = arith.shrui %10, %11 : vector<4x1024xi32>
    %13 = arith.xori %10, %12 : vector<4x1024xi32>
    %c2146121005_i32 = arith.constant 2146121005 : i32
    %14 = vector.broadcast %c2146121005_i32 : i32 to vector<4x1024xi32>
    %15 = arith.muli %13, %14 : vector<4x1024xi32>
    %c15_i32 = arith.constant 15 : i32
    %16 = vector.broadcast %c15_i32 : i32 to vector<4x1024xi32>
    %17 = arith.shrui %15, %16 : vector<4x1024xi32>
    %18 = arith.xori %15, %17 : vector<4x1024xi32>
    %c-2073254261_i32 = arith.constant -2073254261 : i32
    %19 = vector.broadcast %c-2073254261_i32 : i32 to vector<4x1024xi32>
    %20 = arith.muli %18, %19 : vector<4x1024xi32>
    %c16_i32_0 = arith.constant 16 : i32
    %21 = vector.broadcast %c16_i32_0 : i32 to vector<4x1024xi32>
    %22 = arith.shrui %20, %21 : vector<4x1024xi32>
    %23 = arith.xori %20, %22 : vector<4x1024xi32>
    %c1757159915_i32 = arith.constant 1757159915 : i32
    %24 = vector.broadcast %c1757159915_i32 : i32 to vector<4x1024xi32>
    %25 = arith.xori %23, %24 : vector<4x1024xi32>
    %c16_i32_1 = arith.constant 16 : i32
    %26 = vector.broadcast %c16_i32_1 : i32 to vector<4x1024xi32>
    %27 = arith.shrui %25, %26 : vector<4x1024xi32>
    %28 = arith.xori %25, %27 : vector<4x1024xi32>
    %c2146121005_i32_2 = arith.constant 2146121005 : i32
    %29 = vector.broadcast %c2146121005_i32_2 : i32 to vector<4x1024xi32>
    %30 = arith.muli %28, %29 : vector<4x1024xi32>
    %c15_i32_3 = arith.constant 15 : i32
    %31 = vector.broadcast %c15_i32_3 : i32 to vector<4x1024xi32>
    %32 = arith.shrui %30, %31 : vector<4x1024xi32>
    %33 = arith.xori %30, %32 : vector<4x1024xi32>
    %c-2073254261_i32_4 = arith.constant -2073254261 : i32
    %34 = vector.broadcast %c-2073254261_i32_4 : i32 to vector<4x1024xi32>
    %35 = arith.muli %33, %34 : vector<4x1024xi32>
    %c16_i32_5 = arith.constant 16 : i32
    %36 = vector.broadcast %c16_i32_5 : i32 to vector<4x1024xi32>
    %37 = arith.shrui %35, %36 : vector<4x1024xi32>
    %38 = arith.xori %35, %37 : vector<4x1024xi32>
    %c8_i32 = arith.constant 8 : i32
    %39 = vector.broadcast %c8_i32 : i32 to vector<4x1024xi32>
    %40 = arith.shrui %38, %39 : vector<4x1024xi32>
    %41 = arith.sitofp %40 : vector<4x1024xi32> to vector<4x1024xf32>
    %cst = arith.constant 5.000000e-01 : f32
    %42 = vector.broadcast %cst : f32 to vector<4x1024xf32>
    %43 = arith.addf %41, %42 : vector<4x1024xf32>
    %cst_6 = arith.constant 5.96046448E-8 : f32
    %44 = vector.broadcast %cst_6 : f32 to vector<4x1024xf32>
    %45 = arith.mulf %43, %44 : vector<4x1024xf32>
    %c48610963_i32 = arith.constant 48610963 : i32
    %46 = vector.broadcast %c48610963_i32 : i32 to vector<4x1024xi32>
    %47 = arith.xori %23, %46 : vector<4x1024xi32>
    %c16_i32_7 = arith.constant 16 : i32
    %48 = vector.broadcast %c16_i32_7 : i32 to vector<4x1024xi32>
    %49 = arith.shrui %47, %48 : vector<4x1024xi32>
    %50 = arith.xori %47, %49 : vector<4x1024xi32>
    %c2146121005_i32_8 = arith.constant 2146121005 : i32
    %51 = vector.broadcast %c2146121005_i32_8 : i32 to vector<4x1024xi32>
    %52 = arith.muli %50, %51 : vector<4x1024xi32>
    %c15_i32_9 = arith.constant 15 : i32
    %53 = vector.broadcast %c15_i32_9 : i32 to vector<4x1024xi32>
    %54 = arith.shrui %52, %53 : vector<4x1024xi32>
    %55 = arith.xori %52, %54 : vector<4x1024xi32>
    %c-2073254261_i32_10 = arith.constant -2073254261 : i32
    %56 = vector.broadcast %c-2073254261_i32_10 : i32 to vector<4x1024xi32>
    %57 = arith.muli %55, %56 : vector<4x1024xi32>
    %c16_i32_11 = arith.constant 16 : i32
    %58 = vector.broadcast %c16_i32_11 : i32 to vector<4x1024xi32>
    %59 = arith.shrui %57, %58 : vector<4x1024xi32>
    %60 = arith.xori %57, %59 : vector<4x1024xi32>
    %c8_i32_12 = arith.constant 8 : i32
    %61 = vector.broadcast %c8_i32_12 : i32 to vector<4x1024xi32>
    %62 = arith.shrui %60, %61 : vector<4x1024xi32>
    %63 = arith.sitofp %62 : vector<4x1024xi32> to vector<4x1024xf32>
    %cst_13 = arith.constant 5.000000e-01 : f32
    %64 = vector.broadcast %cst_13 : f32 to vector<4x1024xf32>
    %65 = arith.addf %63, %64 : vector<4x1024xf32>
    %cst_14 = arith.constant 5.96046448E-8 : f32
    %66 = vector.broadcast %cst_14 : f32 to vector<4x1024xf32>
    %67 = arith.mulf %65, %66 : vector<4x1024xf32>
    %68 = math.log %45 : vector<4x1024xf32>
    %cst_15 = arith.constant -2.000000e+00 : f32
    %69 = vector.broadcast %cst_15 : f32 to vector<4x1024xf32>
    %70 = arith.mulf %69, %68 : vector<4x1024xf32>
    %71 = math.sqrt %70 : vector<4x1024xf32>
    %cst_16 = arith.constant 6.28318548 : f32
    %72 = vector.broadcast %cst_16 : f32 to vector<4x1024xf32>
    %73 = arith.mulf %72, %67 : vector<4x1024xf32>
    %74 = math.cos %73 : vector<4x1024xf32>
    %75 = arith.mulf %71, %74 : vector<4x1024xf32>
    %76 = math.sin %73 : vector<4x1024xf32>
    %77 = arith.mulf %71, %76 : vector<4x1024xf32>
    %78 = tpu.concatenate %75, %77 in 0 : vector<4x1024xf32>, vector<4x1024xf32> -> vector<8x1024xf32>
    %c0_17 = arith.constant 0 : index
    %c0_18 = arith.constant 0 : index
    %79 = vector.load %arg2[%c0_17, %c0_18] : memref<8x1024xf32, #tpu.memory_space<vmem>>, vector<8x1024xf32>
    %cst_19 = arith.constant 1.000000e-01 : f32
    %80 = vector.broadcast %cst_19 : f32 to vector<8x1024xf32>
    %81 = arith.mulf %80, %78 : vector<8x1024xf32>
    %cst_20 = arith.constant 1.000000e+00 : f32
    %82 = vector.broadcast %cst_20 : f32 to vector<8x1024xf32>
    %83 = arith.addf %82, %81 : vector<8x1024xf32>
    %84 = arith.mulf %79, %83 : vector<8x1024xf32>
    %c0_21 = arith.constant 0 : index
    %c0_22 = arith.constant 0 : index
    %85 = vector.load %arg3[%c0_21, %c0_22] : memref<8x1024xf32, #tpu.memory_space<vmem>>, vector<8x1024xf32>
    tpu.vector_store %arg3[%c0_21, %c0_22], %84 {strides = array<i32>} : memref<8x1024xf32, #tpu.memory_space<vmem>>, vector<8x1024xf32>,
    return
  }
  func.func @transform_0(%arg0: i32) -> i32 {
    %c0_i32 = arith.constant 0 : i32
    %c0_i32_0 = arith.constant 0 : i32
    return %c0_i32 : i32
  }
  func.func @transform_1(%arg0: i32) -> (i32, i32) {
    %c0_i32 = arith.constant 0 : i32
    %c0_i32_0 = arith.constant 0 : i32
    return %arg0, %c0_i32 : i32, i32
  }
  func.func @transform_2(%arg0: i32) -> (i32, i32) {
    %c0_i32 = arith.constant 0 : i32
    %c0_i32_0 = arith.constant 0 : i32
    return %arg0, %c0_i32 : i32, i32
  }
}

</mosaic_0001>

<llo_original>
// kernel: tpu_custom_call.1
$region0: #{tpu_custom_call.1}
  #allocation0 [shape = 'u32[]', space=smem, size = 0x4, offset = 0x4, fixed_abs, tag = 'smem constant byte address 0x4 - core index']
  #allocation1 [shape = 'u32[144,128]{1,0:T(1,128)}', space=vmem, size = 0x12000, scoped, tag = 'internal scratch']
  #allocation2 [shape = 's32[1]{0:T(128)S(6)}', space=smem, size = 0x200, scoped, tag = 'scoped memory for tpu_custom_call.1']
  %s0 = inlined_call_operand.<no memory space> [shape: s32[1], index: 0, kind: input, shape index: {}]
  %s1 = inlined_call_operand.hbm [shape: f32[8,1024], index: 1, kind: input, shape index: {}]
  %s2 = inlined_call_operand.hbm [shape: f32[8,1024], index: 2, kind: output, shape index: {}]
  %s3 = sld [smem:[#allocation0]]
  $region22: #{tpu_custom_call.1} parent=0
    _
  %s5 = ssub.s32 1, %s3
  %s6 = scalar_select 0, %s5, %s3
  %7 = sst [smem:[#allocation2]] %s0
  $region1: #{tpu_custom_call.1} parent=0
    #allocation3 [shape = 'u8[32768]{0}', space=vmem, size = 0x8000, scoped, tag = 'input window, operand 1, single buffered']
    #allocation4 [shape = 's32[1]{0}', space=sflag, size = 0x4, scoped, tag = 'scoped memory for tpu_custom_call.1']
    #allocation5 [shape = 's32[1]{0}', space=sflag, size = 0x4, scoped, tag = 'scoped memory for tpu_custom_call.1']
    #allocation6 [shape = 'u8[32768]{0}', space=vmem, size = 0x8000, scoped, tag = 'output window, operand 0, single buffered']
    %8 = vsyncpa [#allocation4], 0
    %9 = vsyncpa [#allocation5], 0
    // Predicated region
    $region2: #{tpu_custom_call.1} parent=1 // pred_check
      _
    $region3: #{tpu_custom_call.1} parent=1 // pred_check_branch
      %11 = sbr.rel (0) target = $region5
    $region4: #{tpu_custom_call.1} parent=1 // pred_region
      _
    $region5: #{tpu_custom_call.1} parent=1 // pred_fallthru
      _
    // Predicated region
    $region6: #{tpu_custom_call.1} parent=1 // pred_check
      _
    $region7: #{tpu_custom_call.1} parent=1 // pred_check_branch
      %13 = sbr.rel (0) target = $region9
    $region8: #{tpu_custom_call.1} parent=1 // pred_region
      %s15 = ssub.s32 1024, 1024
      %16 = vsyncadd [#allocation4], %s15
      %s18 = sshll.u32 [#allocation3], 4
      %s19 = int_to_ptr.vmem [resolvable:$true] %s18
      %21 = dma.hbm_to_vmem [thread:$0]  %s1, 1024, %s19, [#allocation4]
    $region9: #{tpu_custom_call.1} parent=1 // pred_fallthru
      _
    // Predicated region
    $region10: #{tpu_custom_call.1} parent=1 // pred_check
      _
    $region11: #{tpu_custom_call.1} parent=1 // pred_check_branch
      %23 = sbr.rel (0) target = $region13
    $region12: #{tpu_custom_call.1} parent=1 // pred_region
      %24 = dma.done [#allocation4], 1024
    $region13: #{tpu_custom_call.1} parent=1 // pred_fallthru
      _
    %v25 = vlaneseq
    %v26 = vshrl.u32 %v25, 7
    %v27 = vlaneseq
    %v28 = vand.u32 %v27, 127
    %v29 = vadd.s32 %v28, 128
    %v30 = vadd.s32 %v28, 256
    %v31 = vadd.s32 %v28, 384
    %v32 = vadd.s32 %v28, 512
    %v33 = vadd.s32 %v28, 640
    %v34 = vadd.s32 %v28, 768
    %v35 = vadd.s32 %v28, 896
    %s36 = smul.u32 0, 4096
    %v37 = vmul.u32 %v26, 1024
    %v38 = vstv %s36
    %v39 = vadd.s32 %v38, %v37
    %v40 = vadd.s32 %v39, %v28
    %v41 = vadd.s32 %v39, %v29
    %v42 = vadd.s32 %v39, %v30
    %v43 = vadd.s32 %v39, %v31
    %v44 = vadd.s32 %v39, %v32
    %v45 = vadd.s32 %v39, %v33
    %v46 = vadd.s32 %v39, %v34
    %v47 = vadd.s32 %v39, %v35
    %s48 = sld [smem:[#allocation2]]
    %v49 = vstv %s48
    %v50 = vxor.u32 %v40, %v49
    %v51 = vxor.u32 %v41, %v49
    %v52 = vxor.u32 %v42, %v49
    %v53 = vxor.u32 %v43, %v49
    %v54 = vxor.u32 %v44, %v49
    %v55 = vxor.u32 %v45, %v49
    %v56 = vxor.u32 %v46, %v49
    %v57 = vxor.u32 %v47, %v49
    %v58 = vshrl.u32 %v50, 16
    %v59 = vshrl.u32 %v51, 16
    %v60 = vshrl.u32 %v52, 16
    %v61 = vshrl.u32 %v53, 16
    %v62 = vshrl.u32 %v54, 16
    %v63 = vshrl.u32 %v55, 16
    %v64 = vshrl.u32 %v56, 16
    %v65 = vshrl.u32 %v57, 16
    %v66 = vxor.u32 %v50, %v58
    %v67 = vxor.u32 %v51, %v59
    %v68 = vxor.u32 %v52, %v60
    %v69 = vxor.u32 %v53, %v61
    %v70 = vxor.u32 %v54, %v62
    %v71 = vxor.u32 %v55, %v63
    %v72 = vxor.u32 %v56, %v64
    %v73 = vxor.u32 %v57, %v65
    %v74 = vmul.u32 %v66, 2146121005
    %v75 = vmul.u32 %v67, 2146121005
    %v76 = vmul.u32 %v68, 2146121005
    %v77 = vmul.u32 %v69, 2146121005
    %v78 = vmul.u32 %v70, 2146121005
    %v79 = vmul.u32 %v71, 2146121005
    %v80 = vmul.u32 %v72, 2146121005
    %v81 = vmul.u32 %v73, 2146121005
    %v82 = vshrl.u32 %v74, 15
    %v83 = vshrl.u32 %v75, 15
    %v84 = vshrl.u32 %v76, 15
    %v85 = vshrl.u32 %v77, 15
    %v86 = vshrl.u32 %v78, 15
    %v87 = vshrl.u32 %v79, 15
    %v88 = vshrl.u32 %v80, 15
    %v89 = vshrl.u32 %v81, 15
    %v90 = vxor.u32 %v74, %v82
    %v91 = vxor.u32 %v75, %v83
    %v92 = vxor.u32 %v76, %v84
    %v93 = vxor.u32 %v77, %v85
    %v94 = vxor.u32 %v78, %v86
    %v95 = vxor.u32 %v79, %v87
    %v96 = vxor.u32 %v80, %v88
    %v97 = vxor.u32 %v81, %v89
    %v98 = vmul.u32 %v90, 2221713035
    %v99 = vmul.u32 %v91, 2221713035
    %v100 = vmul.u32 %v92, 2221713035
    %v101 = vmul.u32 %v93, 2221713035
    %v102 = vmul.u32 %v94, 2221713035
    %v103 = vmul.u32 %v95, 2221713035
    %v104 = vmul.u32 %v96, 2221713035
    %v105 = vmul.u32 %v97, 2221713035
    %v106 = vshrl.u32 %v98, 16
    %v107 = vshrl.u32 %v99, 16
    %v108 = vshrl.u32 %v100, 16
    %v109 = vshrl.u32 %v101, 16
    %v110 = vshrl.u32 %v102, 16
    %v111 = vshrl.u32 %v103, 16
    %v112 = vshrl.u32 %v104, 16
    %v113 = vshrl.u32 %v105, 16
    %v114 = vxor.u32 %v98, %v106
    %v115 = vxor.u32 %v99, %v107
    %v116 = vxor.u32 %v100, %v108
    %v117 = vxor.u32 %v101, %v109
    %v118 = vxor.u32 %v102, %v110
    %v119 = vxor.u32 %v103, %v111
    %v120 = vxor.u32 %v104, %v112
    %v121 = vxor.u32 %v105, %v113
    %v122 = vxor.u32 %v114, 1757159915
    %v123 = vxor.u32 %v115, 1757159915
    %v124 = vxor.u32 %v116, 1757159915
    %v125 = vxor.u32 %v117, 1757159915
    %v126 = vxor.u32 %v118, 1757159915
    %v127 = vxor.u32 %v119, 1757159915
    %v128 = vxor.u32 %v120, 1757159915
    %v129 = vxor.u32 %v121, 1757159915
    %v130 = vshrl.u32 %v122, 16
    %v131 = vshrl.u32 %v123, 16
    %v132 = vshrl.u32 %v124, 16
    %v133 = vshrl.u32 %v125, 16
    %v134 = vshrl.u32 %v126, 16
    %v135 = vshrl.u32 %v127, 16
    %v136 = vshrl.u32 %v128, 16
    %v137 = vshrl.u32 %v129, 16
    %v138 = vxor.u32 %v122, %v130
    %v139 = vxor.u32 %v123, %v131
    %v140 = vxor.u32 %v124, %v132
    %v141 = vxor.u32 %v125, %v133
    %v142 = vxor.u32 %v126, %v134
    %v143 = vxor.u32 %v127, %v135
    %v144 = vxor.u32 %v128, %v136
    %v145 = vxor.u32 %v129, %v137
    %v146 = vmul.u32 %v138, 2146121005
    %v147 = vmul.u32 %v139, 2146121005
    %v148 = vmul.u32 %v140, 2146121005
    %v149 = vmul.u32 %v141, 2146121005
    %v150 = vmul.u32 %v142, 2146121005
    %v151 = vmul.u32 %v143, 2146121005
    %v152 = vmul.u32 %v144, 2146121005
    %v153 = vmul.u32 %v145, 2146121005
    %v154 = vshrl.u32 %v146, 15
    %v155 = vshrl.u32 %v147, 15
    %v156 = vshrl.u32 %v148, 15
    %v157 = vshrl.u32 %v149, 15
    %v158 = vshrl.u32 %v150, 15
    %v159 = vshrl.u32 %v151, 15
    %v160 = vshrl.u32 %v152, 15
    %v161 = vshrl.u32 %v153, 15
    %v162 = vxor.u32 %v146, %v154
    %v163 = vxor.u32 %v147, %v155
    %v164 = vxor.u32 %v148, %v156
    %v165 = vxor.u32 %v149, %v157
    %v166 = vxor.u32 %v150, %v158
    %v167 = vxor.u32 %v151, %v159
    %v168 = vxor.u32 %v152, %v160
    %v169 = vxor.u32 %v153, %v161
    %v170 = vmul.u32 %v162, 2221713035
    %v171 = vmul.u32 %v163, 2221713035
    %v172 = vmul.u32 %v164, 2221713035
    %v173 = vmul.u32 %v165, 2221713035
    %v174 = vmul.u32 %v166, 2221713035
    %v175 = vmul.u32 %v167, 2221713035
    %v176 = vmul.u32 %v168, 2221713035
    %v177 = vmul.u32 %v169, 2221713035
    %v178 = vshrl.u32 %v170, 16
    %v179 = vshrl.u32 %v171, 16
    %v180 = vshrl.u32 %v172, 16
    %v181 = vshrl.u32 %v173, 16
    %v182 = vshrl.u32 %v174, 16
    %v183 = vshrl.u32 %v175, 16
    %v184 = vshrl.u32 %v176, 16
    %v185 = vshrl.u32 %v177, 16
    %v186 = vxor.u32 %v170, %v178
    %v187 = vxor.u32 %v171, %v179
    %v188 = vxor.u32 %v172, %v180
    %v189 = vxor.u32 %v173, %v181
    %v190 = vxor.u32 %v174, %v182
    %v191 = vxor.u32 %v175, %v183
    %v192 = vxor.u32 %v176, %v184
    %v193 = vxor.u32 %v177, %v185
    %v194 = vshrl.u32 %v186, 8
    %v195 = vshrl.u32 %v187, 8
    %v196 = vshrl.u32 %v188, 8
    %v197 = vshrl.u32 %v189, 8
    %v198 = vshrl.u32 %v190, 8
    %v199 = vshrl.u32 %v191, 8
    %v200 = vshrl.u32 %v192, 8
    %v201 = vshrl.u32 %v193, 8
    %v202 = vcvt.s32.f32 %v194
    %v203 = vcvt.s32.f32 %v195
    %v204 = vcvt.s32.f32 %v196
    %v205 = vcvt.s32.f32 %v197
    %v206 = vcvt.s32.f32 %v198
    %v207 = vcvt.s32.f32 %v199
    %v208 = vcvt.s32.f32 %v200
    %v209 = vcvt.s32.f32 %v201
    %v210 = vadd.f32 %v202, 0.5
    %v211 = vadd.f32 %v203, 0.5
    %v212 = vadd.f32 %v204, 0.5
    %v213 = vadd.f32 %v205, 0.5
    %v214 = vadd.f32 %v206, 0.5
    %v215 = vadd.f32 %v207, 0.5
    %v216 = vadd.f32 %v208, 0.5
    %v217 = vadd.f32 %v209, 0.5
    %v218 = vmul.f32 %v210, 5.9604645e-08
    %v219 = vmul.f32 %v211, 5.9604645e-08
    %v220 = vmul.f32 %v212, 5.9604645e-08
    %v221 = vmul.f32 %v213, 5.9604645e-08
    %v222 = vmul.f32 %v214, 5.9604645e-08
    %v223 = vmul.f32 %v215, 5.9604645e-08
    %v224 = vmul.f32 %v216, 5.9604645e-08
    %v225 = vmul.f32 %v217, 5.9604645e-08
    %v226 = vxor.u32 %v114, 48610963
    %v227 = vxor.u32 %v115, 48610963
    %v228 = vxor.u32 %v116, 48610963
    %v229 = vxor.u32 %v117, 48610963
    %v230 = vxor.u32 %v118, 48610963
    %v231 = vxor.u32 %v119, 48610963
    %v232 = vxor.u32 %v120, 48610963
    %v233 = vxor.u32 %v121, 48610963
    %v234 = vshrl.u32 %v226, 16
    %v235 = vshrl.u32 %v227, 16
    %v236 = vshrl.u32 %v228, 16
    %v237 = vshrl.u32 %v229, 16
    %v238 = vshrl.u32 %v230, 16
    %v239 = vshrl.u32 %v231, 16
    %v240 = vshrl.u32 %v232, 16
    %v241 = vshrl.u32 %v233, 16
    %v242 = vxor.u32 %v226, %v234
    %v243 = vxor.u32 %v227, %v235
    %v244 = vxor.u32 %v228, %v236
    %v245 = vxor.u32 %v229, %v237
    %v246 = vxor.u32 %v230, %v238
    %v247 = vxor.u32 %v231, %v239
    %v248 = vxor.u32 %v232, %v240
    %v249 = vxor.u32 %v233, %v241
    %v250 = vmul.u32 %v242, 2146121005
    %v251 = vmul.u32 %v243, 2146121005
    %v252 = vmul.u32 %v244, 2146121005
    %v253 = vmul.u32 %v245, 2146121005
    %v254 = vmul.u32 %v246, 2146121005
    %v255 = vmul.u32 %v247, 2146121005
    %v256 = vmul.u32 %v248, 2146121005
    %v257 = vmul.u32 %v249, 2146121005
    %v258 = vshrl.u32 %v250, 15
    %v259 = vshrl.u32 %v251, 15
    %v260 = vshrl.u32 %v252, 15
    %v261 = vshrl.u32 %v253, 15
    %v262 = vshrl.u32 %v254, 15
    %v263 = vshrl.u32 %v255, 15
    %v264 = vshrl.u32 %v256, 15
    %v265 = vshrl.u32 %v257, 15
    %v266 = vxor.u32 %v250, %v258
    %v267 = vxor.u32 %v251, %v259
    %v268 = vxor.u32 %v252, %v260
    %v269 = vxor.u32 %v253, %v261
    %v270 = vxor.u32 %v254, %v262
    %v271 = vxor.u32 %v255, %v263
    %v272 = vxor.u32 %v256, %v264
    %v273 = vxor.u32 %v257, %v265
    %v274 = vmul.u32 %v266, 2221713035
    %v275 = vmul.u32 %v267, 2221713035
    %v276 = vmul.u32 %v268, 2221713035
    %v277 = vmul.u32 %v269, 2221713035
    %v278 = vmul.u32 %v270, 2221713035
    %v279 = vmul.u32 %v271, 2221713035
    %v280 = vmul.u32 %v272, 2221713035
    %v281 = vmul.u32 %v273, 2221713035
    %v282 = vshrl.u32 %v274, 16
    %v283 = vshrl.u32 %v275, 16
    %v284 = vshrl.u32 %v276, 16
    %v285 = vshrl.u32 %v277, 16
    %v286 = vshrl.u32 %v278, 16
    %v287 = vshrl.u32 %v279, 16
    %v288 = vshrl.u32 %v280, 16
    %v289 = vshrl.u32 %v281, 16
    %v290 = vxor.u32 %v274, %v282
    %v291 = vxor.u32 %v275, %v283
    %v292 = vxor.u32 %v276, %v284
    %v293 = vxor.u32 %v277, %v285
    %v294 = vxor.u32 %v278, %v286
    %v295 = vxor.u32 %v279, %v287
    %v296 = vxor.u32 %v280, %v288
    %v297 = vxor.u32 %v281, %v289
    %v298 = vshrl.u32 %v290, 8
    %v299 = vshrl.u32 %v291, 8
    %v300 = vshrl.u32 %v292, 8
    %v301 = vshrl.u32 %v293, 8
    %v302 = vshrl.u32 %v294, 8
    %v303 = vshrl.u32 %v295, 8
    %v304 = vshrl.u32 %v296, 8
    %v305 = vshrl.u32 %v297, 8
    %v306 = vcvt.s32.f32 %v298
    %v307 = vcvt.s32.f32 %v299
    %v308 = vcvt.s32.f32 %v300
    %v309 = vcvt.s32.f32 %v301
    %v310 = vcvt.s32.f32 %v302
    %v311 = vcvt.s32.f32 %v303
    %v312 = vcvt.s32.f32 %v304
    %v313 = vcvt.s32.f32 %v305
    %v314 = vadd.f32 %v306, 0.5
    %v315 = vadd.f32 %v307, 0.5
    %v316 = vadd.f32 %v308, 0.5
    %v317 = vadd.f32 %v309, 0.5
    %v318 = vadd.f32 %v310, 0.5
    %v319 = vadd.f32 %v311, 0.5
    %v320 = vadd.f32 %v312, 0.5
    %v321 = vadd.f32 %v313, 0.5
    %v322 = vmul.f32 %v314, 5.9604645e-08
    %v323 = vmul.f32 %v315, 5.9604645e-08
    %v324 = vmul.f32 %v316, 5.9604645e-08
    %v325 = vmul.f32 %v317, 5.9604645e-08
    %v326 = vmul.f32 %v318, 5.9604645e-08
    %v327 = vmul.f32 %v319, 5.9604645e-08
    %v328 = vmul.f32 %v320, 5.9604645e-08
    %v329 = vmul.f32 %v321, 5.9604645e-08
    %v330 = vlog2.pop %v218
    %v331 = vmul.f32 %v330, 0.6931472
    %v332 = vlog2.pop %v219
    %v333 = vmul.f32 %v332, 0.6931472
    %v334 = vlog2.pop %v220
    %v335 = vmul.f32 %v334, 0.6931472
    %v336 = vlog2.pop %v221
    %v337 = vmul.f32 %v336, 0.6931472
    %v338 = vlog2.pop %v222
    %v339 = vmul.f32 %v338, 0.6931472
    %v340 = vlog2.pop %v223
    %v341 = vmul.f32 %v340, 0.6931472
    %v342 = vlog2.pop %v224
    %v343 = vmul.f32 %v342, 0.6931472
    %v344 = vlog2.pop %v225
    %v345 = vmul.f32 %v344, 0.6931472
    %v346 = vmul.f32 %v331, -2.0
    %v347 = vmul.f32 %v333, -2.0
    %v348 = vmul.f32 %v335, -2.0
    %v349 = vmul.f32 %v337, -2.0
    %v350 = vmul.f32 %v339, -2.0
    %v351 = vmul.f32 %v341, -2.0
    %v352 = vmul.f32 %v343, -2.0
    %v353 = vmul.f32 %v345, -2.0
    %v354 = vrsqrt.pop %v346
    %v355 = vmul.f32 %v346, %v354
    %vm356 = vcmp.eq.f32.partialorder %v346, inf
    %v357 = vsel %vm356, %v346, %v355
    %vm358 = vcmp.eq.f32.partialorder %v346, 0.0
    %v359 = vand.u32 %v346, 2147483648
    %v360 = vsel %vm358, %v359, %v357
    %v361 = vrsqrt.pop %v347
    %v362 = vmul.f32 %v347, %v361
    %vm363 = vcmp.eq.f32.partialorder %v347, inf
    %v364 = vsel %vm363, %v347, %v362
    %vm365 = vcmp.eq.f32.partialorder %v347, 0.0
    %v366 = vand.u32 %v347, 2147483648
    %v367 = vsel %vm365, %v366, %v364
    %v368 = vrsqrt.pop %v348
    %v369 = vmul.f32 %v348, %v368
    %vm370 = vcmp.eq.f32.partialorder %v348, inf
    %v371 = vsel %vm370, %v348, %v369
    %vm372 = vcmp.eq.f32.partialorder %v348, 0.0
    %v373 = vand.u32 %v348, 2147483648
    %v374 = vsel %vm372, %v373, %v371
    %v375 = vrsqrt.pop %v349
    %v376 = vmul.f32 %v349, %v375
    %vm377 = vcmp.eq.f32.partialorder %v349, inf
    %v378 = vsel %vm377, %v349, %v376
    %vm379 = vcmp.eq.f32.partialorder %v349, 0.0
    %v380 = vand.u32 %v349, 2147483648
    %v381 = vsel %vm379, %v380, %v378
    %v382 = vrsqrt.pop %v350
    %v383 = vmul.f32 %v350, %v382
    %vm384 = vcmp.eq.f32.partialorder %v350, inf
    %v385 = vsel %vm384, %v350, %v383
    %vm386 = vcmp.eq.f32.partialorder %v350, 0.0
    %v387 = vand.u32 %v350, 2147483648
    %v388 = vsel %vm386, %v387, %v385
    %v389 = vrsqrt.pop %v351
    %v390 = vmul.f32 %v351, %v389
    %vm391 = vcmp.eq.f32.partialorder %v351, inf
    %v392 = vsel %vm391, %v351, %v390
    %vm393 = vcmp.eq.f32.partialorder %v351, 0.0
    %v394 = vand.u32 %v351, 2147483648
    %v395 = vsel %vm393, %v394, %v392
    %v396 = vrsqrt.pop %v352
    %v397 = vmul.f32 %v352, %v396
    %vm398 = vcmp.eq.f32.partialorder %v352, inf
    %v399 = vsel %vm398, %v352, %v397
    %vm400 = vcmp.eq.f32.partialorder %v352, 0.0
    %v401 = vand.u32 %v352, 2147483648
    %v402 = vsel %vm400, %v401, %v399
    %v403 = vrsqrt.pop %v353
    %v404 = vmul.f32 %v353, %v403
    %vm405 = vcmp.eq.f32.partialorder %v353, inf
    %v406 = vsel %vm405, %v353, %v404
    %vm407 = vcmp.eq.f32.partialorder %v353, 0.0
    %v408 = vand.u32 %v353, 2147483648
    %v409 = vsel %vm407, %v408, %v406
    %v410 = vmul.f32 %v322, 6.2831855
    %v411 = vmul.f32 %v323, 6.2831855
    %v412 = vmul.f32 %v324, 6.2831855
    %v413 = vmul.f32 %v325, 6.2831855
    %v414 = vmul.f32 %v326, 6.2831855
    %v415 = vmul.f32 %v327, 6.2831855
    %v416 = vmul.f32 %v328, 6.2831855
    %v417 = vmul.f32 %v329, 6.2831855
    %v418 = vand.u32 2147483647, %v410
    %vm419 = vcmp.le.f32.partialorder %v418, 0.7853982
    %vm420 = vcmp.lt.s32.totalorder %v410, 0
    %v421 = vand.u32 %v410, 2139095040
    %v422 = vshrl.u32 %v421, 23
    %v423 = vsub.s32 %v422, 127
    %v424 = vand.u32 2147483647, %v410
    %v425 = vand.u32 %v424, 8388607
    %v426 = vor.u32 %v425, 8388608
    %v427 = vsub.s32 0, %v426
    %v428 = vadd.s32 %v423, 1
    %vm429 = vcmp.gt.s32.totalorder %v428, 0
    %v430 = vsel %vm429, %v428, 0
    %v431 = vshrl.u32 %v430, 5
    %v432 = vand.u32 %v430, 31
    %v433 = vsub.s32 32, %v432
    %v434 = vshrl.u32 683565275, %v433
    %v435 = vshll.u32 683565275, %v432
    %v436 = vshrl.u32 2475754826, %v433
    %v437 = vor.u32 %v435, %v436
    %v438 = vshll.u32 2475754826, %v432
    %v439 = vshrl.u32 2131351028, %v433
    %v440 = vor.u32 %v438, %v439
    %v441 = vshll.u32 2131351028, %v432
    %v442 = vshrl.u32 2102212464, %v433
    %v443 = vor.u32 %v441, %v442
    %v444 = vshll.u32 2102212464, %v432
    %v445 = vshrl.u32 920167782, %v433
    %v446 = vor.u32 %v444, %v445
    %v447 = vshll.u32 920167782, %v432
    %v448 = vshrl.u32 1326507024, %v433
    %v449 = vor.u32 %v447, %v448
    %vm450 = vcmp.lt.s32.totalorder %v431, 1
    %vm451 = vcmp.lt.s32.totalorder %v431, 2
    %vm452 = vcmp.lt.s32.totalorder %v431, 3
    %vm453 = vcmp.lt.s32.totalorder %v431, 4
    %v454 = vsel %vm450, %v434, %v437
    %v455 = vsel %vm453, %v443, 2102212464
    %v456 = vsel %vm452, %v440, %v455
    %v457 = vsel %vm451, %v454, %v456
    %v458 = vsel %vm450, %v437, %v440
    %v459 = vsel %vm453, %v446, 920167782
    %v460 = vsel %vm452, %v443, %v459
    %v461 = vsel %vm451, %v458, %v460
    %v462 = vsel %vm450, %v440, %v443
    %v463 = vsel %vm453, %v449, 1326507024
    %v464 = vsel %vm452, %v446, %v463
    %v465 = vsel %vm451, %v462, %v464
    %v466 = vshll.u32 %v426, 8
    %v467 = vmul.u32.u64.compose %v466, %v465
    %v468 = vextract.low.u32 %v467
    %v469 = vextract.high.u32 %v467
    %v470 = vmul.u32.u64.compose %v466, %v461
    %v471 = vextract.low.u32 %v470
    %v472 = vextract.high.u32 %v470
    %v473 = vmul.u32 %v466, %v457
    %v474 = vadd.s32 %v469, %v471
    %vm475 = vc.u32 %v469, %v471
    %v476 = vadd.s32 %v472, 1
    %v477 = vsel %vm475, %v476, %v472
    %v478 = vadd.s32 %v473, %v477
    %v479 = vadd.s32 %v478, 536870912
    %v480 = vshrl.u32 %v479, 30
    %v481 = vshll.u32 %v480, 30
    %v482 = vsub.s32 %v478, %v481
    %vm483 = vcmp.lt.s32.totalorder %v482, 0
    %v484 = vsub.s32 0, %v482
    %v485 = vsel %vm483, %v484, %v482
    %v486 = vclz %v485
    %v487 = vsub.s32 %v486, 2
    %vm488 = vcmp.gt.s32.totalorder 0, %v487
    %v489 = vsel %vm488, 0, %v487
    %v490 = vsub.s32 32, %v489
    %v491 = vshll.u32 %v482, %v489
    %v492 = vshrl.u32 %v474, %v490
    %v493 = vor.u32 %v491, %v492
    %v494 = vsub.s32 4294967266, %v489
    %v495 = vadd.s32 %v494, 127
    %v496 = vshll.u32 %v495, 23
    %v497 = vor.u32 4788187, %v496
    %v498 = vand.u32 2147483647, %v497
    %v500 = vcvt.s32.f32 %v493
    %v501 = vmul.f32 %v500, %v498
    %v502 = vxor.u32 %v501, 2147483648
    %v503 = vsel %vm420, %v502, %v501
    %v504 = vsub.s32 4, %v480
    %v505 = vsel %vm420, %v504, %v480
    %v506 = vsel %vm419, %v410, %v503
    %v507 = vsel %vm419, 0, %v505
    %v508 = vcosq.f32.pop %v506
    %v509 = vsinq.f32.pop %v506
    %vm510 = vweird.f32 %v410
    %v511 = vand.u32 %v507, 3
    %vm512 = vcmp.lt.s32.totalorder %v511, 2
    %vm513 = vcmp.eq.s32.totalorder %v511, 0
    %v514 = vxor.u32 %v509, 2147483648
    %v515 = vsel %vm513, %v508, %v514
    %vm516 = vcmp.eq.s32.totalorder %v511, 2
    %v517 = vxor.u32 %v508, 2147483648
    %v518 = vsel %vm516, %v517, %v509
    %v519 = vsel %vm512, %v515, %v518
    %v520 = vsel %vm510, nan, %v519
    %v521 = vand.u32 2147483647, %v411
    %vm522 = vcmp.le.f32.partialorder %v521, 0.7853982
    %vm523 = vcmp.lt.s32.totalorder %v411, 0
    %v524 = vand.u32 %v411, 2139095040
    %v525 = vshrl.u32 %v524, 23
    %v526 = vsub.s32 %v525, 127
    %v527 = vand.u32 2147483647, %v411
    %v528 = vand.u32 %v527, 8388607
    %v529 = vor.u32 %v528, 8388608
    %v530 = vsub.s32 0, %v529
    %v531 = vadd.s32 %v526, 1
    %vm532 = vcmp.gt.s32.totalorder %v531, 0
    %v533 = vsel %vm532, %v531, 0
    %v534 = vshrl.u32 %v533, 5
    %v535 = vand.u32 %v533, 31
    %v536 = vsub.s32 32, %v535
    %v537 = vshrl.u32 683565275, %v536
    %v538 = vshll.u32 683565275, %v535
    %v539 = vshrl.u32 2475754826, %v536
    %v540 = vor.u32 %v538, %v539
    %v541 = vshll.u32 2475754826, %v535
    %v542 = vshrl.u32 2131351028, %v536
    %v543 = vor.u32 %v541, %v542
    %v544 = vshll.u32 2131351028, %v535
    %v545 = vshrl.u32 2102212464, %v536
    %v546 = vor.u32 %v544, %v545
    %v547 = vshll.u32 2102212464, %v535
    %v548 = vshrl.u32 920167782, %v536
    %v549 = vor.u32 %v547, %v548
    %v550 = vshll.u32 920167782, %v535
    %v551 = vshrl.u32 1326507024, %v536
    %v552 = vor.u32 %v550, %v551
    %vm553 = vcmp.lt.s32.totalorder %v534, 1
    %vm554 = vcmp.lt.s32.totalorder %v534, 2
    %vm555 = vcmp.lt.s32.totalorder %v534, 3
    %vm556 = vcmp.lt.s32.totalorder %v534, 4
    %v557 = vsel %vm553, %v537, %v540
    %v558 = vsel %vm556, %v546, 2102212464
    %v559 = vsel %vm555, %v543, %v558
    %v560 = vsel %vm554, %v557, %v559
    %v561 = vsel %vm553, %v540, %v543
    %v562 = vsel %vm556, %v549, 920167782
    %v563 = vsel %vm555, %v546, %v562
    %v564 = vsel %vm554, %v561, %v563
    %v565 = vsel %vm553, %v543, %v546
    %v566 = vsel %vm556, %v552, 1326507024
    %v567 = vsel %vm555, %v549, %v566
    %v568 = vsel %vm554, %v565, %v567
    %v569 = vshll.u32 %v529, 8
    %v570 = vmul.u32.u64.compose %v569, %v568
    %v571 = vextract.low.u32 %v570
    %v572 = vextract.high.u32 %v570
    %v573 = vmul.u32.u64.compose %v569, %v564
    %v574 = vextract.low.u32 %v573
    %v575 = vextract.high.u32 %v573
    %v576 = vmul.u32 %v569, %v560
    %v577 = vadd.s32 %v572, %v574
    %vm578 = vc.u32 %v572, %v574
    %v579 = vadd.s32 %v575, 1
    %v580 = vsel %vm578, %v579, %v575
    %v581 = vadd.s32 %v576, %v580
    %v582 = vadd.s32 %v581, 536870912
    %v583 = vshrl.u32 %v582, 30
    %v584 = vshll.u32 %v583, 30
    %v585 = vsub.s32 %v581, %v584
    %vm586 = vcmp.lt.s32.totalorder %v585, 0
    %v587 = vsub.s32 0, %v585
    %v588 = vsel %vm586, %v587, %v585
    %v589 = vclz %v588
    %v590 = vsub.s32 %v589, 2
    %vm591 = vcmp.gt.s32.totalorder 0, %v590
    %v592 = vsel %vm591, 0, %v590
    %v593 = vsub.s32 32, %v592
    %v594 = vshll.u32 %v585, %v592
    %v595 = vshrl.u32 %v577, %v593
    %v596 = vor.u32 %v594, %v595
    %v597 = vsub.s32 4294967266, %v592
    %v598 = vadd.s32 %v597, 127
    %v599 = vshll.u32 %v598, 23
    %v600 = vor.u32 4788187, %v599
    %v601 = vand.u32 2147483647, %v600
    %v603 = vcvt.s32.f32 %v596
    %v604 = vmul.f32 %v603, %v601
    %v605 = vxor.u32 %v604, 2147483648
    %v606 = vsel %vm523, %v605, %v604
    %v607 = vsub.s32 4, %v583
    %v608 = vsel %vm523, %v607, %v583
    %v609 = vsel %vm522, %v411, %v606
    %v610 = vsel %vm522, 0, %v608
    %v611 = vcosq.f32.pop %v609
    %v612 = vsinq.f32.pop %v609
    %vm613 = vweird.f32 %v411
    %v614 = vand.u32 %v610, 3
    %vm615 = vcmp.lt.s32.totalorder %v614, 2
    %vm616 = vcmp.eq.s32.totalorder %v614, 0
    %v617 = vxor.u32 %v612, 2147483648
    %v618 = vsel %vm616, %v611, %v617
    %vm619 = vcmp.eq.s32.totalorder %v614, 2
    %v620 = vxor.u32 %v611, 2147483648
    %v621 = vsel %vm619, %v620, %v612
    %v622 = vsel %vm615, %v618, %v621
    %v623 = vsel %vm613, nan, %v622
    %v624 = vand.u32 2147483647, %v412
    %vm625 = vcmp.le.f32.partialorder %v624, 0.7853982
    %vm626 = vcmp.lt.s32.totalorder %v412, 0
    %v627 = vand.u32 %v412, 2139095040
    %v628 = vshrl.u32 %v627, 23
    %v629 = vsub.s32 %v628, 127
    %v630 = vand.u32 2147483647, %v412
    %v631 = vand.u32 %v630, 8388607
    %v632 = vor.u32 %v631, 8388608
    %v633 = vsub.s32 0, %v632
    %v634 = vadd.s32 %v629, 1
    %vm635 = vcmp.gt.s32.totalorder %v634, 0
    %v636 = vsel %vm635, %v634, 0
    %v637 = vshrl.u32 %v636, 5
    %v638 = vand.u32 %v636, 31
    %v639 = vsub.s32 32, %v638
    %v640 = vshrl.u32 683565275, %v639
    %v641 = vshll.u32 683565275, %v638
    %v642 = vshrl.u32 2475754826, %v639
    %v643 = vor.u32 %v641, %v642
    %v644 = vshll.u32 2475754826, %v638
    %v645 = vshrl.u32 2131351028, %v639
    %v646 = vor.u32 %v644, %v645
    %v647 = vshll.u32 2131351028, %v638
    %v648 = vshrl.u32 2102212464, %v639
    %v649 = vor.u32 %v647, %v648
    %v650 = vshll.u32 2102212464, %v638
    %v651 = vshrl.u32 920167782, %v639
    %v652 = vor.u32 %v650, %v651
    %v653 = vshll.u32 920167782, %v638
    %v654 = vshrl.u32 1326507024, %v639
    %v655 = vor.u32 %v653, %v654
    %vm656 = vcmp.lt.s32.totalorder %v637, 1
    %vm657 = vcmp.lt.s32.totalorder %v637, 2
    %vm658 = vcmp.lt.s32.totalorder %v637, 3
    %vm659 = vcmp.lt.s32.totalorder %v637, 4
    %v660 = vsel %vm656, %v640, %v643
    %v661 = vsel %vm659, %v649, 2102212464
    %v662 = vsel %vm658, %v646, %v661
    %v663 = vsel %vm657, %v660, %v662
    %v664 = vsel %vm656, %v643, %v646
    %v665 = vsel %vm659, %v652, 920167782
    %v666 = vsel %vm658, %v649, %v665
    %v667 = vsel %vm657, %v664, %v666
    %v668 = vsel %vm656, %v646, %v649
    %v669 = vsel %vm659, %v655, 1326507024
    %v670 = vsel %vm658, %v652, %v669
    %v671 = vsel %vm657, %v668, %v670
    %v672 = vshll.u32 %v632, 8
    %v673 = vmul.u32.u64.compose %v672, %v671
    %v674 = vextract.low.u32 %v673
    %v675 = vextract.high.u32 %v673
    %v676 = vmul.u32.u64.compose %v672, %v667
    %v677 = vextract.low.u32 %v676
    %v678 = vextract.high.u32 %v676
    %v679 = vmul.u32 %v672, %v663
    %v680 = vadd.s32 %v675, %v677
    %vm681 = vc.u32 %v675, %v677
    %v682 = vadd.s32 %v678, 1
    %v683 = vsel %vm681, %v682, %v678
    %v684 = vadd.s32 %v679, %v683
    %v685 = vadd.s32 %v684, 536870912
    %v686 = vshrl.u32 %v685, 30
    %v687 = vshll.u32 %v686, 30
    %v688 = vsub.s32 %v684, %v687
    %vm689 = vcmp.lt.s32.totalorder %v688, 0
    %v690 = vsub.s32 0, %v688
    %v691 = vsel %vm689, %v690, %v688
    %v692 = vclz %v691
    %v693 = vsub.s32 %v692, 2
    %vm694 = vcmp.gt.s32.totalorder 0, %v693
    %v695 = vsel %vm694, 0, %v693
    %v696 = vsub.s32 32, %v695
    %v697 = vshll.u32 %v688, %v695
    %v698 = vshrl.u32 %v680, %v696
    %v699 = vor.u32 %v697, %v698
    %v700 = vsub.s32 4294967266, %v695
    %v701 = vadd.s32 %v700, 127
    %v702 = vshll.u32 %v701, 23
    %v703 = vor.u32 4788187, %v702
    %v704 = vand.u32 2147483647, %v703
    %v706 = vcvt.s32.f32 %v699
    %v707 = vmul.f32 %v706, %v704
    %v708 = vxor.u32 %v707, 2147483648
    %v709 = vsel %vm626, %v708, %v707
    %v710 = vsub.s32 4, %v686
    %v711 = vsel %vm626, %v710, %v686
    %v712 = vsel %vm625, %v412, %v709
    %v713 = vsel %vm625, 0, %v711
    %v714 = vcosq.f32.pop %v712
    %v715 = vsinq.f32.pop %v712
    %vm716 = vweird.f32 %v412
    %v717 = vand.u32 %v713, 3
    %vm718 = vcmp.lt.s32.totalorder %v717, 2
    %vm719 = vcmp.eq.s32.totalorder %v717, 0
    %v720 = vxor.u32 %v715, 2147483648
    %v721 = vsel %vm719, %v714, %v720
    %vm722 = vcmp.eq.s32.totalorder %v717, 2
    %v723 = vxor.u32 %v714, 2147483648
    %v724 = vsel %vm722, %v723, %v715
    %v725 = vsel %vm718, %v721, %v724
    %v726 = vsel %vm716, nan, %v725
    %v727 = vand.u32 2147483647, %v413
    %vm728 = vcmp.le.f32.partialorder %v727, 0.7853982
    %vm729 = vcmp.lt.s32.totalorder %v413, 0
    %v730 = vand.u32 %v413, 2139095040
    %v731 = vshrl.u32 %v730, 23
    %v732 = vsub.s32 %v731, 127
    %v733 = vand.u32 2147483647, %v413
    %v734 = vand.u32 %v733, 8388607
    %v735 = vor.u32 %v734, 8388608
    %v736 = vsub.s32 0, %v735
    %v737 = vadd.s32 %v732, 1
    %vm738 = vcmp.gt.s32.totalorder %v737, 0
    %v739 = vsel %vm738, %v737, 0
    %v740 = vshrl.u32 %v739, 5
    %v741 = vand.u32 %v739, 31
    %v742 = vsub.s32 32, %v741
    %v743 = vshrl.u32 683565275, %v742
    %v744 = vshll.u32 683565275, %v741
    %v745 = vshrl.u32 2475754826, %v742
    %v746 = vor.u32 %v744, %v745
    %v747 = vshll.u32 2475754826, %v741
    %v748 = vshrl.u32 2131351028, %v742
    %v749 = vor.u32 %v747, %v748
    %v750 = vshll.u32 2131351028, %v741
    %v751 = vshrl.u32 2102212464, %v742
    %v752 = vor.u32 %v750, %v751
    %v753 = vshll.u32 2102212464, %v741
    %v754 = vshrl.u32 920167782, %v742
    %v755 = vor.u32 %v753, %v754
    %v756 = vshll.u32 920167782, %v741
    %v757 = vshrl.u32 1326507024, %v742
    %v758 = vor.u32 %v756, %v757
    %vm759 = vcmp.lt.s32.totalorder %v740, 1
    %vm760 = vcmp.lt.s32.totalorder %v740, 2
    %vm761 = vcmp.lt.s32.totalorder %v740, 3
    %vm762 = vcmp.lt.s32.totalorder %v740, 4
    %v763 = vsel %vm759, %v743, %v746
    %v764 = vsel %vm762, %v752, 2102212464
    %v765 = vsel %vm761, %v749, %v764
    %v766 = vsel %vm760, %v763, %v765
    %v767 = vsel %vm759, %v746, %v749
    %v768 = vsel %vm762, %v755, 920167782
    %v769 = vsel %vm761, %v752, %v768
    %v770 = vsel %vm760, %v767, %v769
    %v771 = vsel %vm759, %v749, %v752
    %v772 = vsel %vm762, %v758, 1326507024
    %v773 = vsel %vm761, %v755, %v772
    %v774 = vsel %vm760, %v771, %v773
    %v775 = vshll.u32 %v735, 8
    %v776 = vmul.u32.u64.compose %v775, %v774
    %v777 = vextract.low.u32 %v776
    %v778 = vextract.high.u32 %v776
    %v779 = vmul.u32.u64.compose %v775, %v770
    %v780 = vextract.low.u32 %v779
    %v781 = vextract.high.u32 %v779
    %v782 = vmul.u32 %v775, %v766
    %v783 = vadd.s32 %v778, %v780
    %vm784 = vc.u32 %v778, %v780
    %v785 = vadd.s32 %v781, 1
    %v786 = vsel %vm784, %v785, %v781
    %v787 = vadd.s32 %v782, %v786
    %v788 = vadd.s32 %v787, 536870912
    %v789 = vshrl.u32 %v788, 30
    %v790 = vshll.u32 %v789, 30
    %v791 = vsub.s32 %v787, %v790
    %vm792 = vcmp.lt.s32.totalorder %v791, 0
    %v793 = vsub.s32 0, %v791
    %v794 = vsel %vm792, %v793, %v791
    %v795 = vclz %v794
    %v796 = vsub.s32 %v795, 2
    %vm797 = vcmp.gt.s32.totalorder 0, %v796
    %v798 = vsel %vm797, 0, %v796
    %v799 = vsub.s32 32, %v798
    %v800 = vshll.u32 %v791, %v798
    %v801 = vshrl.u32 %v783, %v799
    %v802 = vor.u32 %v800, %v801
    %v803 = vsub.s32 4294967266, %v798
    %v804 = vadd.s32 %v803, 127
    %v805 = vshll.u32 %v804, 23
    %v806 = vor.u32 4788187, %v805
    %v807 = vand.u32 2147483647, %v806
    %v809 = vcvt.s32.f32 %v802
    %v810 = vmul.f32 %v809, %v807
    %v811 = vxor.u32 %v810, 2147483648
    %v812 = vsel %vm729, %v811, %v810
    %v813 = vsub.s32 4, %v789
    %v814 = vsel %vm729, %v813, %v789
    %v815 = vsel %vm728, %v413, %v812
    %v816 = vsel %vm728, 0, %v814
    %v817 = vcosq.f32.pop %v815
    %v818 = vsinq.f32.pop %v815
    %vm819 = vweird.f32 %v413
    %v820 = vand.u32 %v816, 3
    %vm821 = vcmp.lt.s32.totalorder %v820, 2
    %vm822 = vcmp.eq.s32.totalorder %v820, 0
    %v823 = vxor.u32 %v818, 2147483648
    %v824 = vsel %vm822, %v817, %v823
    %vm825 = vcmp.eq.s32.totalorder %v820, 2
    %v826 = vxor.u32 %v817, 2147483648
    %v827 = vsel %vm825, %v826, %v818
    %v828 = vsel %vm821, %v824, %v827
    %v829 = vsel %vm819, nan, %v828
    %v830 = vand.u32 2147483647, %v414
    %vm831 = vcmp.le.f32.partialorder %v830, 0.7853982
    %vm832 = vcmp.lt.s32.totalorder %v414, 0
    %v833 = vand.u32 %v414, 2139095040
    %v834 = vshrl.u32 %v833, 23
    %v835 = vsub.s32 %v834, 127
    %v836 = vand.u32 2147483647, %v414
    %v837 = vand.u32 %v836, 8388607
    %v838 = vor.u32 %v837, 8388608
    %v839 = vsub.s32 0, %v838
    %v840 = vadd.s32 %v835, 1
    %vm841 = vcmp.gt.s32.totalorder %v840, 0
    %v842 = vsel %vm841, %v840, 0
    %v843 = vshrl.u32 %v842, 5
    %v844 = vand.u32 %v842, 31
    %v845 = vsub.s32 32, %v844
    %v846 = vshrl.u32 683565275, %v845
    %v847 = vshll.u32 683565275, %v844
    %v848 = vshrl.u32 2475754826, %v845
    %v849 = vor.u32 %v847, %v848
    %v850 = vshll.u32 2475754826, %v844
    %v851 = vshrl.u32 2131351028, %v845
    %v852 = vor.u32 %v850, %v851
    %v853 = vshll.u32 2131351028, %v844
    %v854 = vshrl.u32 2102212464, %v845
    %v855 = vor.u32 %v853, %v854
    %v856 = vshll.u32 2102212464, %v844
    %v857 = vshrl.u32 920167782, %v845
    %v858 = vor.u32 %v856, %v857
    %v859 = vshll.u32 920167782, %v844
    %v860 = vshrl.u32 1326507024, %v845
    %v861 = vor.u32 %v859, %v860
    %vm862 = vcmp.lt.s32.totalorder %v843, 1
    %vm863 = vcmp.lt.s32.totalorder %v843, 2
    %vm864 = vcmp.lt.s32.totalorder %v843, 3
    %vm865 = vcmp.lt.s32.totalorder %v843, 4
    %v866 = vsel %vm862, %v846, %v849
    %v867 = vsel %vm865, %v855, 2102212464
    %v868 = vsel %vm864, %v852, %v867
    %v869 = vsel %vm863, %v866, %v868
    %v870 = vsel %vm862, %v849, %v852
    %v871 = vsel %vm865, %v858, 920167782
    %v872 = vsel %vm864, %v855, %v871
    %v873 = vsel %vm863, %v870, %v872
    %v874 = vsel %vm862, %v852, %v855
    %v875 = vsel %vm865, %v861, 1326507024
    %v876 = vsel %vm864, %v858, %v875
    %v877 = vsel %vm863, %v874, %v876
    %v878 = vshll.u32 %v838, 8
    %v879 = vmul.u32.u64.compose %v878, %v877
    %v880 = vextract.low.u32 %v879
    %v881 = vextract.high.u32 %v879
    %v882 = vmul.u32.u64.compose %v878, %v873
    %v883 = vextract.low.u32 %v882
    %v884 = vextract.high.u32 %v882
    %v885 = vmul.u32 %v878, %v869
    %v886 = vadd.s32 %v881, %v883
    %vm887 = vc.u32 %v881, %v883
    %v888 = vadd.s32 %v884, 1
    %v889 = vsel %vm887, %v888, %v884
    %v890 = vadd.s32 %v885, %v889
    %v891 = vadd.s32 %v890, 536870912
    %v892 = vshrl.u32 %v891, 30
    %v893 = vshll.u32 %v892, 30
    %v894 = vsub.s32 %v890, %v893
    %vm895 = vcmp.lt.s32.totalorder %v894, 0
    %v896 = vsub.s32 0, %v894
    %v897 = vsel %vm895, %v896, %v894
    %v898 = vclz %v897
    %v899 = vsub.s32 %v898, 2
    %vm900 = vcmp.gt.s32.totalorder 0, %v899
    %v901 = vsel %vm900, 0, %v899
    %v902 = vsub.s32 32, %v901
    %v903 = vshll.u32 %v894, %v901
    %v904 = vshrl.u32 %v886, %v902
    %v905 = vor.u32 %v903, %v904
    %v906 = vsub.s32 4294967266, %v901
    %v907 = vadd.s32 %v906, 127
    %v908 = vshll.u32 %v907, 23
    %v909 = vor.u32 4788187, %v908
    %v910 = vand.u32 2147483647, %v909
    %v912 = vcvt.s32.f32 %v905
    %v913 = vmul.f32 %v912, %v910
    %v914 = vxor.u32 %v913, 2147483648
    %v915 = vsel %vm832, %v914, %v913
    %v916 = vsub.s32 4, %v892
    %v917 = vsel %vm832, %v916, %v892
    %v918 = vsel %vm831, %v414, %v915
    %v919 = vsel %vm831, 0, %v917
    %v920 = vcosq.f32.pop %v918
    %v921 = vsinq.f32.pop %v918
    %vm922 = vweird.f32 %v414
    %v923 = vand.u32 %v919, 3
    %vm924 = vcmp.lt.s32.totalorder %v923, 2
    %vm925 = vcmp.eq.s32.totalorder %v923, 0
    %v926 = vxor.u32 %v921, 2147483648
    %v927 = vsel %vm925, %v920, %v926
    %vm928 = vcmp.eq.s32.totalorder %v923, 2
    %v929 = vxor.u32 %v920, 2147483648
    %v930 = vsel %vm928, %v929, %v921
    %v931 = vsel %vm924, %v927, %v930
    %v932 = vsel %vm922, nan, %v931
    %v933 = vand.u32 2147483647, %v415
    %vm934 = vcmp.le.f32.partialorder %v933, 0.7853982
    %vm935 = vcmp.lt.s32.totalorder %v415, 0
    %v936 = vand.u32 %v415, 2139095040
    %v937 = vshrl.u32 %v936, 23
    %v938 = vsub.s32 %v937, 127
    %v939 = vand.u32 2147483647, %v415
    %v940 = vand.u32 %v939, 8388607
    %v941 = vor.u32 %v940, 8388608
    %v942 = vsub.s32 0, %v941
    %v943 = vadd.s32 %v938, 1
    %vm944 = vcmp.gt.s32.totalorder %v943, 0
    %v945 = vsel %vm944, %v943, 0
    %v946 = vshrl.u32 %v945, 5
    %v947 = vand.u32 %v945, 31
    %v948 = vsub.s32 32, %v947
    %v949 = vshrl.u32 683565275, %v948
    %v950 = vshll.u32 683565275, %v947
    %v951 = vshrl.u32 2475754826, %v948
    %v952 = vor.u32 %v950, %v951
    %v953 = vshll.u32 2475754826, %v947
    %v954 = vshrl.u32 2131351028, %v948
    %v955 = vor.u32 %v953, %v954
    %v956 = vshll.u32 2131351028, %v947
    %v957 = vshrl.u32 2102212464, %v948
    %v958 = vor.u32 %v956, %v957
    %v959 = vshll.u32 2102212464, %v947
    %v960 = vshrl.u32 920167782, %v948
    %v961 = vor.u32 %v959, %v960
    %v962 = vshll.u32 920167782, %v947
    %v963 = vshrl.u32 1326507024, %v948
    %v964 = vor.u32 %v962, %v963
    %vm965 = vcmp.lt.s32.totalorder %v946, 1
    %vm966 = vcmp.lt.s32.totalorder %v946, 2
    %vm967 = vcmp.lt.s32.totalorder %v946, 3
    %vm968 = vcmp.lt.s32.totalorder %v946, 4
    %v969 = vsel %vm965, %v949, %v952
    %v970 = vsel %vm968, %v958, 2102212464
    %v971 = vsel %vm967, %v955, %v970
    %v972 = vsel %vm966, %v969, %v971
    %v973 = vsel %vm965, %v952, %v955
    %v974 = vsel %vm968, %v961, 920167782
    %v975 = vsel %vm967, %v958, %v974
    %v976 = vsel %vm966, %v973, %v975
    %v977 = vsel %vm965, %v955, %v958
    %v978 = vsel %vm968, %v964, 1326507024
    %v979 = vsel %vm967, %v961, %v978
    %v980 = vsel %vm966, %v977, %v979
    %v981 = vshll.u32 %v941, 8
    %v982 = vmul.u32.u64.compose %v981, %v980
    %v983 = vextract.low.u32 %v982
    %v984 = vextract.high.u32 %v982
    %v985 = vmul.u32.u64.compose %v981, %v976
    %v986 = vextract.low.u32 %v985
    %v987 = vextract.high.u32 %v985
    %v988 = vmul.u32 %v981, %v972
    %v989 = vadd.s32 %v984, %v986
    %vm990 = vc.u32 %v984, %v986
    %v991 = vadd.s32 %v987, 1
    %v992 = vsel %vm990, %v991, %v987
    %v993 = vadd.s32 %v988, %v992
    %v994 = vadd.s32 %v993, 536870912
    %v995 = vshrl.u32 %v994, 30
    %v996 = vshll.u32 %v995, 30
    %v997 = vsub.s32 %v993, %v996
    %vm998 = vcmp.lt.s32.totalorder %v997, 0
    %v999 = vsub.s32 0, %v997
    %v1000 = vsel %vm998, %v999, %v997
    %v1001 = vclz %v1000
    %v1002 = vsub.s32 %v1001, 2
    %vm1003 = vcmp.gt.s32.totalorder 0, %v1002
    %v1004 = vsel %vm1003, 0, %v1002
    %v1005 = vsub.s32 32, %v1004
    %v1006 = vshll.u32 %v997, %v1004
    %v1007 = vshrl.u32 %v989, %v1005
    %v1008 = vor.u32 %v1006, %v1007
    %v1009 = vsub.s32 4294967266, %v1004
    %v1010 = vadd.s32 %v1009, 127
    %v1011 = vshll.u32 %v1010, 23
    %v1012 = vor.u32 4788187, %v1011
    %v1013 = vand.u32 2147483647, %v1012
    %v1015 = vcvt.s32.f32 %v1008
    %v1016 = vmul.f32 %v1015, %v1013
    %v1017 = vxor.u32 %v1016, 2147483648
    %v1018 = vsel %vm935, %v1017, %v1016
    %v1019 = vsub.s32 4, %v995
    %v1020 = vsel %vm935, %v1019, %v995
    %v1021 = vsel %vm934, %v415, %v1018
    %v1022 = vsel %vm934, 0, %v1020
    %v1023 = vcosq.f32.pop %v1021
    %v1024 = vsinq.f32.pop %v1021
    %vm1025 = vweird.f32 %v415
    %v1026 = vand.u32 %v1022, 3
    %vm1027 = vcmp.lt.s32.totalorder %v1026, 2
    %vm1028 = vcmp.eq.s32.totalorder %v1026, 0
    %v1029 = vxor.u32 %v1024, 2147483648
    %v1030 = vsel %vm1028, %v1023, %v1029
    %vm1031 = vcmp.eq.s32.totalorder %v1026, 2
    %v1032 = vxor.u32 %v1023, 2147483648
    %v1033 = vsel %vm1031, %v1032, %v1024
    %v1034 = vsel %vm1027, %v1030, %v1033
    %v1035 = vsel %vm1025, nan, %v1034
    %v1036 = vand.u32 2147483647, %v416
    %vm1037 = vcmp.le.f32.partialorder %v1036, 0.7853982
    %vm1038 = vcmp.lt.s32.totalorder %v416, 0
    %v1039 = vand.u32 %v416, 2139095040
    %v1040 = vshrl.u32 %v1039, 23
    %v1041 = vsub.s32 %v1040, 127
    %v1042 = vand.u32 2147483647, %v416
    %v1043 = vand.u32 %v1042, 8388607
    %v1044 = vor.u32 %v1043, 8388608
    %v1045 = vsub.s32 0, %v1044
    %v1046 = vadd.s32 %v1041, 1
    %vm1047 = vcmp.gt.s32.totalorder %v1046, 0
    %v1048 = vsel %vm1047, %v1046, 0
    %v1049 = vshrl.u32 %v1048, 5
    %v1050 = vand.u32 %v1048, 31
    %v1051 = vsub.s32 32, %v1050
    %v1052 = vshrl.u32 683565275, %v1051
    %v1053 = vshll.u32 683565275, %v1050
    %v1054 = vshrl.u32 2475754826, %v1051
    %v1055 = vor.u32 %v1053, %v1054
    %v1056 = vshll.u32 2475754826, %v1050
    %v1057 = vshrl.u32 2131351028, %v1051
    %v1058 = vor.u32 %v1056, %v1057
    %v1059 = vshll.u32 2131351028, %v1050
    %v1060 = vshrl.u32 2102212464, %v1051
    %v1061 = vor.u32 %v1059, %v1060
    %v1062 = vshll.u32 2102212464, %v1050
    %v1063 = vshrl.u32 920167782, %v1051
    %v1064 = vor.u32 %v1062, %v1063
    %v1065 = vshll.u32 920167782, %v1050
    %v1066 = vshrl.u32 1326507024, %v1051
    %v1067 = vor.u32 %v1065, %v1066
    %vm1068 = vcmp.lt.s32.totalorder %v1049, 1
    %vm1069 = vcmp.lt.s32.totalorder %v1049, 2
    %vm1070 = vcmp.lt.s32.totalorder %v1049, 3
    %vm1071 = vcmp.lt.s32.totalorder %v1049, 4
    %v1072 = vsel %vm1068, %v1052, %v1055
    %v1073 = vsel %vm1071, %v1061, 2102212464
    %v1074 = vsel %vm1070, %v1058, %v1073
    %v1075 = vsel %vm1069, %v1072, %v1074
    %v1076 = vsel %vm1068, %v1055, %v1058
    %v1077 = vsel %vm1071, %v1064, 920167782
    %v1078 = vsel %vm1070, %v1061, %v1077
    %v1079 = vsel %vm1069, %v1076, %v1078
    %v1080 = vsel %vm1068, %v1058, %v1061
    %v1081 = vsel %vm1071, %v1067, 1326507024
    %v1082 = vsel %vm1070, %v1064, %v1081
    %v1083 = vsel %vm1069, %v1080, %v1082
    %v1084 = vshll.u32 %v1044, 8
    %v1085 = vmul.u32.u64.compose %v1084, %v1083
    %v1086 = vextract.low.u32 %v1085
    %v1087 = vextract.high.u32 %v1085
    %v1088 = vmul.u32.u64.compose %v1084, %v1079
    %v1089 = vextract.low.u32 %v1088
    %v1090 = vextract.high.u32 %v1088
    %v1091 = vmul.u32 %v1084, %v1075
    %v1092 = vadd.s32 %v1087, %v1089
    %vm1093 = vc.u32 %v1087, %v1089
    %v1094 = vadd.s32 %v1090, 1
    %v1095 = vsel %vm1093, %v1094, %v1090
    %v1096 = vadd.s32 %v1091, %v1095
    %v1097 = vadd.s32 %v1096, 536870912
    %v1098 = vshrl.u32 %v1097, 30
    %v1099 = vshll.u32 %v1098, 30
    %v1100 = vsub.s32 %v1096, %v1099
    %vm1101 = vcmp.lt.s32.totalorder %v1100, 0
    %v1102 = vsub.s32 0, %v1100
    %v1103 = vsel %vm1101, %v1102, %v1100
    %v1104 = vclz %v1103
    %v1105 = vsub.s32 %v1104, 2
    %vm1106 = vcmp.gt.s32.totalorder 0, %v1105
    %v1107 = vsel %vm1106, 0, %v1105
    %v1108 = vsub.s32 32, %v1107
    %v1109 = vshll.u32 %v1100, %v1107
    %v1110 = vshrl.u32 %v1092, %v1108
    %v1111 = vor.u32 %v1109, %v1110
    %v1112 = vsub.s32 4294967266, %v1107
    %v1113 = vadd.s32 %v1112, 127
    %v1114 = vshll.u32 %v1113, 23
    %v1115 = vor.u32 4788187, %v1114
    %v1116 = vand.u32 2147483647, %v1115
    %v1118 = vcvt.s32.f32 %v1111
    %v1119 = vmul.f32 %v1118, %v1116
    %v1120 = vxor.u32 %v1119, 2147483648
    %v1121 = vsel %vm1038, %v1120, %v1119
    %v1122 = vsub.s32 4, %v1098
    %v1123 = vsel %vm1038, %v1122, %v1098
    %v1124 = vsel %vm1037, %v416, %v1121
    %v1125 = vsel %vm1037, 0, %v1123
    %v1126 = vcosq.f32.pop %v1124
    %v1127 = vsinq.f32.pop %v1124
    %vm1128 = vweird.f32 %v416
    %v1129 = vand.u32 %v1125, 3
    %vm1130 = vcmp.lt.s32.totalorder %v1129, 2
    %vm1131 = vcmp.eq.s32.totalorder %v1129, 0
    %v1132 = vxor.u32 %v1127, 2147483648
    %v1133 = vsel %vm1131, %v1126, %v1132
    %vm1134 = vcmp.eq.s32.totalorder %v1129, 2
    %v1135 = vxor.u32 %v1126, 2147483648
    %v1136 = vsel %vm1134, %v1135, %v1127
    %v1137 = vsel %vm1130, %v1133, %v1136
    %v1138 = vsel %vm1128, nan, %v1137
    %v1139 = vand.u32 2147483647, %v417
    %vm1140 = vcmp.le.f32.partialorder %v1139, 0.7853982
    %vm1141 = vcmp.lt.s32.totalorder %v417, 0
    %v1142 = vand.u32 %v417, 2139095040
    %v1143 = vshrl.u32 %v1142, 23
    %v1144 = vsub.s32 %v1143, 127
    %v1145 = vand.u32 2147483647, %v417
    %v1146 = vand.u32 %v1145, 8388607
    %v1147 = vor.u32 %v1146, 8388608
    %v1148 = vsub.s32 0, %v1147
    %v1149 = vadd.s32 %v1144, 1
    %vm1150 = vcmp.gt.s32.totalorder %v1149, 0
    %v1151 = vsel %vm1150, %v1149, 0
    %v1152 = vshrl.u32 %v1151, 5
    %v1153 = vand.u32 %v1151, 31
    %v1154 = vsub.s32 32, %v1153
    %v1155 = vshrl.u32 683565275, %v1154
    %v1156 = vshll.u32 683565275, %v1153
    %v1157 = vshrl.u32 2475754826, %v1154
    %v1158 = vor.u32 %v1156, %v1157
    %v1159 = vshll.u32 2475754826, %v1153
    %v1160 = vshrl.u32 2131351028, %v1154
    %v1161 = vor.u32 %v1159, %v1160
    %v1162 = vshll.u32 2131351028, %v1153
    %v1163 = vshrl.u32 2102212464, %v1154
    %v1164 = vor.u32 %v1162, %v1163
    %v1165 = vshll.u32 2102212464, %v1153
    %v1166 = vshrl.u32 920167782, %v1154
    %v1167 = vor.u32 %v1165, %v1166
    %v1168 = vshll.u32 920167782, %v1153
    %v1169 = vshrl.u32 1326507024, %v1154
    %v1170 = vor.u32 %v1168, %v1169
    %vm1171 = vcmp.lt.s32.totalorder %v1152, 1
    %vm1172 = vcmp.lt.s32.totalorder %v1152, 2
    %vm1173 = vcmp.lt.s32.totalorder %v1152, 3
    %vm1174 = vcmp.lt.s32.totalorder %v1152, 4
    %v1175 = vsel %vm1171, %v1155, %v1158
    %v1176 = vsel %vm1174, %v1164, 2102212464
    %v1177 = vsel %vm1173, %v1161, %v1176
    %v1178 = vsel %vm1172, %v1175, %v1177
    %v1179 = vsel %vm1171, %v1158, %v1161
    %v1180 = vsel %vm1174, %v1167, 920167782
    %v1181 = vsel %vm1173, %v1164, %v1180
    %v1182 = vsel %vm1172, %v1179, %v1181
    %v1183 = vsel %vm1171, %v1161, %v1164
    %v1184 = vsel %vm1174, %v1170, 1326507024
    %v1185 = vsel %vm1173, %v1167, %v1184
    %v1186 = vsel %vm1172, %v1183, %v1185
    %v1187 = vshll.u32 %v1147, 8
    %v1188 = vmul.u32.u64.compose %v1187, %v1186
    %v1189 = vextract.low.u32 %v1188
    %v1190 = vextract.high.u32 %v1188
    %v1191 = vmul.u32.u64.compose %v1187, %v1182
    %v1192 = vextract.low.u32 %v1191
    %v1193 = vextract.high.u32 %v1191
    %v1194 = vmul.u32 %v1187, %v1178
    %v1195 = vadd.s32 %v1190, %v1192
    %vm1196 = vc.u32 %v1190, %v1192
    %v1197 = vadd.s32 %v1193, 1
    %v1198 = vsel %vm1196, %v1197, %v1193
    %v1199 = vadd.s32 %v1194, %v1198
    %v1200 = vadd.s32 %v1199, 536870912
    %v1201 = vshrl.u32 %v1200, 30
    %v1202 = vshll.u32 %v1201, 30
    %v1203 = vsub.s32 %v1199, %v1202
    %vm1204 = vcmp.lt.s32.totalorder %v1203, 0
    %v1205 = vsub.s32 0, %v1203
    %v1206 = vsel %vm1204, %v1205, %v1203
    %v1207 = vclz %v1206
    %v1208 = vsub.s32 %v1207, 2
    %vm1209 = vcmp.gt.s32.totalorder 0, %v1208
    %v1210 = vsel %vm1209, 0, %v1208
    %v1211 = vsub.s32 32, %v1210
    %v1212 = vshll.u32 %v1203, %v1210
    %v1213 = vshrl.u32 %v1195, %v1211
    %v1214 = vor.u32 %v1212, %v1213
    %v1215 = vsub.s32 4294967266, %v1210
    %v1216 = vadd.s32 %v1215, 127
    %v1217 = vshll.u32 %v1216, 23
    %v1218 = vor.u32 4788187, %v1217
    %v1219 = vand.u32 2147483647, %v1218
    %v1221 = vcvt.s32.f32 %v1214
    %v1222 = vmul.f32 %v1221, %v1219
    %v1223 = vxor.u32 %v1222, 2147483648
    %v1224 = vsel %vm1141, %v1223, %v1222
    %v1225 = vsub.s32 4, %v1201
    %v1226 = vsel %vm1141, %v1225, %v1201
    %v1227 = vsel %vm1140, %v417, %v1224
    %v1228 = vsel %vm1140, 0, %v1226
    %v1229 = vcosq.f32.pop %v1227
    %v1230 = vsinq.f32.pop %v1227
    %vm1231 = vweird.f32 %v417
    %v1232 = vand.u32 %v1228, 3
    %vm1233 = vcmp.lt.s32.totalorder %v1232, 2
    %vm1234 = vcmp.eq.s32.totalorder %v1232, 0
    %v1235 = vxor.u32 %v1230, 2147483648
    %v1236 = vsel %vm1234, %v1229, %v1235
    %vm1237 = vcmp.eq.s32.totalorder %v1232, 2
    %v1238 = vxor.u32 %v1229, 2147483648
    %v1239 = vsel %vm1237, %v1238, %v1230
    %v1240 = vsel %vm1233, %v1236, %v1239
    %v1241 = vsel %vm1231, nan, %v1240
    %v1242 = vmul.f32 %v360, %v520
    %v1243 = vmul.f32 %v367, %v623
    %v1244 = vmul.f32 %v374, %v726
    %v1245 = vmul.f32 %v381, %v829
    %v1246 = vmul.f32 %v388, %v932
    %v1247 = vmul.f32 %v395, %v1035
    %v1248 = vmul.f32 %v402, %v1138
    %v1249 = vmul.f32 %v409, %v1241
    %v1250 = vand.u32 2147483647, %v410
    %vm1251 = vcmp.le.f32.partialorder %v1250, 0.7853982
    %vm1252 = vcmp.lt.s32.totalorder %v410, 0
    %v1253 = vand.u32 %v410, 2139095040
    %v1254 = vshrl.u32 %v1253, 23
    %v1255 = vsub.s32 %v1254, 127
    %v1256 = vand.u32 2147483647, %v410
    %v1257 = vand.u32 %v1256, 8388607
    %v1258 = vor.u32 %v1257, 8388608
    %v1259 = vsub.s32 0, %v1258
    %v1260 = vadd.s32 %v1255, 1
    %vm1261 = vcmp.gt.s32.totalorder %v1260, 0
    %v1262 = vsel %vm1261, %v1260, 0
    %v1263 = vshrl.u32 %v1262, 5
    %v1264 = vand.u32 %v1262, 31
    %v1265 = vsub.s32 32, %v1264
    %v1266 = vshrl.u32 683565275, %v1265
    %v1267 = vshll.u32 683565275, %v1264
    %v1268 = vshrl.u32 2475754826, %v1265
    %v1269 = vor.u32 %v1267, %v1268
    %v1270 = vshll.u32 2475754826, %v1264
    %v1271 = vshrl.u32 2131351028, %v1265
    %v1272 = vor.u32 %v1270, %v1271
    %v1273 = vshll.u32 2131351028, %v1264
    %v1274 = vshrl.u32 2102212464, %v1265
    %v1275 = vor.u32 %v1273, %v1274
    %v1276 = vshll.u32 2102212464, %v1264
    %v1277 = vshrl.u32 920167782, %v1265
    %v1278 = vor.u32 %v1276, %v1277
    %v1279 = vshll.u32 920167782, %v1264
    %v1280 = vshrl.u32 1326507024, %v1265
    %v1281 = vor.u32 %v1279, %v1280
    %vm1282 = vcmp.lt.s32.totalorder %v1263, 1
    %vm1283 = vcmp.lt.s32.totalorder %v1263, 2
    %vm1284 = vcmp.lt.s32.totalorder %v1263, 3
    %vm1285 = vcmp.lt.s32.totalorder %v1263, 4
    %v1286 = vsel %vm1282, %v1266, %v1269
    %v1287 = vsel %vm1285, %v1275, 2102212464
    %v1288 = vsel %vm1284, %v1272, %v1287
    %v1289 = vsel %vm1283, %v1286, %v1288
    %v1290 = vsel %vm1282, %v1269, %v1272
    %v1291 = vsel %vm1285, %v1278, 920167782
    %v1292 = vsel %vm1284, %v1275, %v1291
    %v1293 = vsel %vm1283, %v1290, %v1292
    %v1294 = vsel %vm1282, %v1272, %v1275
    %v1295 = vsel %vm1285, %v1281, 1326507024
    %v1296 = vsel %vm1284, %v1278, %v1295
    %v1297 = vsel %vm1283, %v1294, %v1296
    %v1298 = vshll.u32 %v1258, 8
    %v1299 = vmul.u32.u64.compose %v1298, %v1297
    %v1300 = vextract.low.u32 %v1299
    %v1301 = vextract.high.u32 %v1299
    %v1302 = vmul.u32.u64.compose %v1298, %v1293
    %v1303 = vextract.low.u32 %v1302
    %v1304 = vextract.high.u32 %v1302
    %v1305 = vmul.u32 %v1298, %v1289
    %v1306 = vadd.s32 %v1301, %v1303
    %vm1307 = vc.u32 %v1301, %v1303
    %v1308 = vadd.s32 %v1304, 1
    %v1309 = vsel %vm1307, %v1308, %v1304
    %v1310 = vadd.s32 %v1305, %v1309
    %v1311 = vadd.s32 %v1310, 536870912
    %v1312 = vshrl.u32 %v1311, 30
    %v1313 = vshll.u32 %v1312, 30
    %v1314 = vsub.s32 %v1310, %v1313
    %vm1315 = vcmp.lt.s32.totalorder %v1314, 0
    %v1316 = vsub.s32 0, %v1314
    %v1317 = vsel %vm1315, %v1316, %v1314
    %v1318 = vclz %v1317
    %v1319 = vsub.s32 %v1318, 2
    %vm1320 = vcmp.gt.s32.totalorder 0, %v1319
    %v1321 = vsel %vm1320, 0, %v1319
    %v1322 = vsub.s32 32, %v1321
    %v1323 = vshll.u32 %v1314, %v1321
    %v1324 = vshrl.u32 %v1306, %v1322
    %v1325 = vor.u32 %v1323, %v1324
    %v1326 = vsub.s32 4294967266, %v1321
    %v1327 = vadd.s32 %v1326, 127
    %v1328 = vshll.u32 %v1327, 23
    %v1329 = vor.u32 4788187, %v1328
    %v1330 = vand.u32 2147483647, %v1329
    %v1332 = vcvt.s32.f32 %v1325
    %v1333 = vmul.f32 %v1332, %v1330
    %v1334 = vxor.u32 %v1333, 2147483648
    %v1335 = vsel %vm1252, %v1334, %v1333
    %v1336 = vsub.s32 4, %v1312
    %v1337 = vsel %vm1252, %v1336, %v1312
    %v1338 = vsel %vm1251, %v410, %v1335
    %v1339 = vsel %vm1251, 0, %v1337
    %v1340 = vcosq.f32.pop %v1338
    %v1341 = vsinq.f32.pop %v1338
    %vm1342 = vweird.f32 %v410
    %v1343 = vadd.s32 %v1339, 3
    %v1344 = vand.u32 %v1343, 3
    %vm1345 = vcmp.lt.s32.totalorder %v1344, 2
    %vm1346 = vcmp.eq.s32.totalorder %v1344, 0
    %v1347 = vxor.u32 %v1341, 2147483648
    %v1348 = vsel %vm1346, %v1340, %v1347
    %vm1349 = vcmp.eq.s32.totalorder %v1344, 2
    %v1350 = vxor.u32 %v1340, 2147483648
    %v1351 = vsel %vm1349, %v1350, %v1341
    %v1352 = vsel %vm1345, %v1348, %v1351
    %v1353 = vsel %vm1342, nan, %v1352
    %v1354 = vand.u32 2147483647, %v411
    %vm1355 = vcmp.le.f32.partialorder %v1354, 0.7853982
    %vm1356 = vcmp.lt.s32.totalorder %v411, 0
    %v1357 = vand.u32 %v411, 2139095040
    %v1358 = vshrl.u32 %v1357, 23
    %v1359 = vsub.s32 %v1358, 127
    %v1360 = vand.u32 2147483647, %v411
    %v1361 = vand.u32 %v1360, 8388607
    %v1362 = vor.u32 %v1361, 8388608
    %v1363 = vsub.s32 0, %v1362
    %v1364 = vadd.s32 %v1359, 1
    %vm1365 = vcmp.gt.s32.totalorder %v1364, 0
    %v1366 = vsel %vm1365, %v1364, 0
    %v1367 = vshrl.u32 %v1366, 5
    %v1368 = vand.u32 %v1366, 31
    %v1369 = vsub.s32 32, %v1368
    %v1370 = vshrl.u32 683565275, %v1369
    %v1371 = vshll.u32 683565275, %v1368
    %v1372 = vshrl.u32 2475754826, %v1369
    %v1373 = vor.u32 %v1371, %v1372
    %v1374 = vshll.u32 2475754826, %v1368
    %v1375 = vshrl.u32 2131351028, %v1369
    %v1376 = vor.u32 %v1374, %v1375
    %v1377 = vshll.u32 2131351028, %v1368
    %v1378 = vshrl.u32 2102212464, %v1369
    %v1379 = vor.u32 %v1377, %v1378
    %v1380 = vshll.u32 2102212464, %v1368
    %v1381 = vshrl.u32 920167782, %v1369
    %v1382 = vor.u32 %v1380, %v1381
    %v1383 = vshll.u32 920167782, %v1368
    %v1384 = vshrl.u32 1326507024, %v1369
    %v1385 = vor.u32 %v1383, %v1384
    %vm1386 = vcmp.lt.s32.totalorder %v1367, 1
    %vm1387 = vcmp.lt.s32.totalorder %v1367, 2
    %vm1388 = vcmp.lt.s32.totalorder %v1367, 3
    %vm1389 = vcmp.lt.s32.totalorder %v1367, 4
    %v1390 = vsel %vm1386, %v1370, %v1373
    %v1391 = vsel %vm1389, %v1379, 2102212464
    %v1392 = vsel %vm1388, %v1376, %v1391
    %v1393 = vsel %vm1387, %v1390, %v1392
    %v1394 = vsel %vm1386, %v1373, %v1376
    %v1395 = vsel %vm1389, %v1382, 920167782
    %v1396 = vsel %vm1388, %v1379, %v1395
    %v1397 = vsel %vm1387, %v1394, %v1396
    %v1398 = vsel %vm1386, %v1376, %v1379
    %v1399 = vsel %vm1389, %v1385, 1326507024
    %v1400 = vsel %vm1388, %v1382, %v1399
    %v1401 = vsel %vm1387, %v1398, %v1400
    %v1402 = vshll.u32 %v1362, 8
    %v1403 = vmul.u32.u64.compose %v1402, %v1401
    %v1404 = vextract.low.u32 %v1403
    %v1405 = vextract.high.u32 %v1403
    %v1406 = vmul.u32.u64.compose %v1402, %v1397
    %v1407 = vextract.low.u32 %v1406
    %v1408 = vextract.high.u32 %v1406
    %v1409 = vmul.u32 %v1402, %v1393
    %v1410 = vadd.s32 %v1405, %v1407
    %vm1411 = vc.u32 %v1405, %v1407
    %v1412 = vadd.s32 %v1408, 1
    %v1413 = vsel %vm1411, %v1412, %v1408
    %v1414 = vadd.s32 %v1409, %v1413
    %v1415 = vadd.s32 %v1414, 536870912
    %v1416 = vshrl.u32 %v1415, 30
    %v1417 = vshll.u32 %v1416, 30
    %v1418 = vsub.s32 %v1414, %v1417
    %vm1419 = vcmp.lt.s32.totalorder %v1418, 0
    %v1420 = vsub.s32 0, %v1418
    %v1421 = vsel %vm1419, %v1420, %v1418
    %v1422 = vclz %v1421
    %v1423 = vsub.s32 %v1422, 2
    %vm1424 = vcmp.gt.s32.totalorder 0, %v1423
    %v1425 = vsel %vm1424, 0, %v1423
    %v1426 = vsub.s32 32, %v1425
    %v1427 = vshll.u32 %v1418, %v1425
    %v1428 = vshrl.u32 %v1410, %v1426
    %v1429 = vor.u32 %v1427, %v1428
    %v1430 = vsub.s32 4294967266, %v1425
    %v1431 = vadd.s32 %v1430, 127
    %v1432 = vshll.u32 %v1431, 23
    %v1433 = vor.u32 4788187, %v1432
    %v1434 = vand.u32 2147483647, %v1433
    %v1436 = vcvt.s32.f32 %v1429
    %v1437 = vmul.f32 %v1436, %v1434
    %v1438 = vxor.u32 %v1437, 2147483648
    %v1439 = vsel %vm1356, %v1438, %v1437
    %v1440 = vsub.s32 4, %v1416
    %v1441 = vsel %vm1356, %v1440, %v1416
    %v1442 = vsel %vm1355, %v411, %v1439
    %v1443 = vsel %vm1355, 0, %v1441
    %v1444 = vcosq.f32.pop %v1442
    %v1445 = vsinq.f32.pop %v1442
    %vm1446 = vweird.f32 %v411
    %v1447 = vadd.s32 %v1443, 3
    %v1448 = vand.u32 %v1447, 3
    %vm1449 = vcmp.lt.s32.totalorder %v1448, 2
    %vm1450 = vcmp.eq.s32.totalorder %v1448, 0
    %v1451 = vxor.u32 %v1445, 2147483648
    %v1452 = vsel %vm1450, %v1444, %v1451
    %vm1453 = vcmp.eq.s32.totalorder %v1448, 2
    %v1454 = vxor.u32 %v1444, 2147483648
    %v1455 = vsel %vm1453, %v1454, %v1445
    %v1456 = vsel %vm1449, %v1452, %v1455
    %v1457 = vsel %vm1446, nan, %v1456
    %v1458 = vand.u32 2147483647, %v412
    %vm1459 = vcmp.le.f32.partialorder %v1458, 0.7853982
    %vm1460 = vcmp.lt.s32.totalorder %v412, 0
    %v1461 = vand.u32 %v412, 2139095040
    %v1462 = vshrl.u32 %v1461, 23
    %v1463 = vsub.s32 %v1462, 127
    %v1464 = vand.u32 2147483647, %v412
    %v1465 = vand.u32 %v1464, 8388607
    %v1466 = vor.u32 %v1465, 8388608
    %v1467 = vsub.s32 0, %v1466
    %v1468 = vadd.s32 %v1463, 1
    %vm1469 = vcmp.gt.s32.totalorder %v1468, 0
    %v1470 = vsel %vm1469, %v1468, 0
    %v1471 = vshrl.u32 %v1470, 5
    %v1472 = vand.u32 %v1470, 31
    %v1473 = vsub.s32 32, %v1472
    %v1474 = vshrl.u32 683565275, %v1473
    %v1475 = vshll.u32 683565275, %v1472
    %v1476 = vshrl.u32 2475754826, %v1473
    %v1477 = vor.u32 %v1475, %v1476
    %v1478 = vshll.u32 2475754826, %v1472
    %v1479 = vshrl.u32 2131351028, %v1473
    %v1480 = vor.u32 %v1478, %v1479
    %v1481 = vshll.u32 2131351028, %v1472
    %v1482 = vshrl.u32 2102212464, %v1473
    %v1483 = vor.u32 %v1481, %v1482
    %v1484 = vshll.u32 2102212464, %v1472
    %v1485 = vshrl.u32 920167782, %v1473
    %v1486 = vor.u32 %v1484, %v1485
    %v1487 = vshll.u32 920167782, %v1472
    %v1488 = vshrl.u32 1326507024, %v1473
    %v1489 = vor.u32 %v1487, %v1488
    %vm1490 = vcmp.lt.s32.totalorder %v1471, 1
    %vm1491 = vcmp.lt.s32.totalorder %v1471, 2
    %vm1492 = vcmp.lt.s32.totalorder %v1471, 3
    %vm1493 = vcmp.lt.s32.totalorder %v1471, 4
    %v1494 = vsel %vm1490, %v1474, %v1477
    %v1495 = vsel %vm1493, %v1483, 2102212464
    %v1496 = vsel %vm1492, %v1480, %v1495
    %v1497 = vsel %vm1491, %v1494, %v1496
    %v1498 = vsel %vm1490, %v1477, %v1480
    %v1499 = vsel %vm1493, %v1486, 920167782
    %v1500 = vsel %vm1492, %v1483, %v1499
    %v1501 = vsel %vm1491, %v1498, %v1500
    %v1502 = vsel %vm1490, %v1480, %v1483
    %v1503 = vsel %vm1493, %v1489, 1326507024
    %v1504 = vsel %vm1492, %v1486, %v1503
    %v1505 = vsel %vm1491, %v1502, %v1504
    %v1506 = vshll.u32 %v1466, 8
    %v1507 = vmul.u32.u64.compose %v1506, %v1505
    %v1508 = vextract.low.u32 %v1507
    %v1509 = vextract.high.u32 %v1507
    %v1510 = vmul.u32.u64.compose %v1506, %v1501
    %v1511 = vextract.low.u32 %v1510
    %v1512 = vextract.high.u32 %v1510
    %v1513 = vmul.u32 %v1506, %v1497
    %v1514 = vadd.s32 %v1509, %v1511
    %vm1515 = vc.u32 %v1509, %v1511
    %v1516 = vadd.s32 %v1512, 1
    %v1517 = vsel %vm1515, %v1516, %v1512
    %v1518 = vadd.s32 %v1513, %v1517
    %v1519 = vadd.s32 %v1518, 536870912
    %v1520 = vshrl.u32 %v1519, 30
    %v1521 = vshll.u32 %v1520, 30
    %v1522 = vsub.s32 %v1518, %v1521
    %vm1523 = vcmp.lt.s32.totalorder %v1522, 0
    %v1524 = vsub.s32 0, %v1522
    %v1525 = vsel %vm1523, %v1524, %v1522
    %v1526 = vclz %v1525
    %v1527 = vsub.s32 %v1526, 2
    %vm1528 = vcmp.gt.s32.totalorder 0, %v1527
    %v1529 = vsel %vm1528, 0, %v1527
    %v1530 = vsub.s32 32, %v1529
    %v1531 = vshll.u32 %v1522, %v1529
    %v1532 = vshrl.u32 %v1514, %v1530
    %v1533 = vor.u32 %v1531, %v1532
    %v1534 = vsub.s32 4294967266, %v1529
    %v1535 = vadd.s32 %v1534, 127
    %v1536 = vshll.u32 %v1535, 23
    %v1537 = vor.u32 4788187, %v1536
    %v1538 = vand.u32 2147483647, %v1537
    %v1540 = vcvt.s32.f32 %v1533
    %v1541 = vmul.f32 %v1540, %v1538
    %v1542 = vxor.u32 %v1541, 2147483648
    %v1543 = vsel %vm1460, %v1542, %v1541
    %v1544 = vsub.s32 4, %v1520
    %v1545 = vsel %vm1460, %v1544, %v1520
    %v1546 = vsel %vm1459, %v412, %v1543
    %v1547 = vsel %vm1459, 0, %v1545
    %v1548 = vcosq.f32.pop %v1546
    %v1549 = vsinq.f32.pop %v1546
    %vm1550 = vweird.f32 %v412
    %v1551 = vadd.s32 %v1547, 3
    %v1552 = vand.u32 %v1551, 3
    %vm1553 = vcmp.lt.s32.totalorder %v1552, 2
    %vm1554 = vcmp.eq.s32.totalorder %v1552, 0
    %v1555 = vxor.u32 %v1549, 2147483648
    %v1556 = vsel %vm1554, %v1548, %v1555
    %vm1557 = vcmp.eq.s32.totalorder %v1552, 2
    %v1558 = vxor.u32 %v1548, 2147483648
    %v1559 = vsel %vm1557, %v1558, %v1549
    %v1560 = vsel %vm1553, %v1556, %v1559
    %v1561 = vsel %vm1550, nan, %v1560
    %v1562 = vand.u32 2147483647, %v413
    %vm1563 = vcmp.le.f32.partialorder %v1562, 0.7853982
    %vm1564 = vcmp.lt.s32.totalorder %v413, 0
    %v1565 = vand.u32 %v413, 2139095040
    %v1566 = vshrl.u32 %v1565, 23
    %v1567 = vsub.s32 %v1566, 127
    %v1568 = vand.u32 2147483647, %v413
    %v1569 = vand.u32 %v1568, 8388607
    %v1570 = vor.u32 %v1569, 8388608
    %v1571 = vsub.s32 0, %v1570
    %v1572 = vadd.s32 %v1567, 1
    %vm1573 = vcmp.gt.s32.totalorder %v1572, 0
    %v1574 = vsel %vm1573, %v1572, 0
    %v1575 = vshrl.u32 %v1574, 5
    %v1576 = vand.u32 %v1574, 31
    %v1577 = vsub.s32 32, %v1576
    %v1578 = vshrl.u32 683565275, %v1577
    %v1579 = vshll.u32 683565275, %v1576
    %v1580 = vshrl.u32 2475754826, %v1577
    %v1581 = vor.u32 %v1579, %v1580
    %v1582 = vshll.u32 2475754826, %v1576
    %v1583 = vshrl.u32 2131351028, %v1577
    %v1584 = vor.u32 %v1582, %v1583
    %v1585 = vshll.u32 2131351028, %v1576
    %v1586 = vshrl.u32 2102212464, %v1577
    %v1587 = vor.u32 %v1585, %v1586
    %v1588 = vshll.u32 2102212464, %v1576
    %v1589 = vshrl.u32 920167782, %v1577
    %v1590 = vor.u32 %v1588, %v1589
    %v1591 = vshll.u32 920167782, %v1576
    %v1592 = vshrl.u32 1326507024, %v1577
    %v1593 = vor.u32 %v1591, %v1592
    %vm1594 = vcmp.lt.s32.totalorder %v1575, 1
    %vm1595 = vcmp.lt.s32.totalorder %v1575, 2
    %vm1596 = vcmp.lt.s32.totalorder %v1575, 3
    %vm1597 = vcmp.lt.s32.totalorder %v1575, 4
    %v1598 = vsel %vm1594, %v1578, %v1581
    %v1599 = vsel %vm1597, %v1587, 2102212464
    %v1600 = vsel %vm1596, %v1584, %v1599
    %v1601 = vsel %vm1595, %v1598, %v1600
    %v1602 = vsel %vm1594, %v1581, %v1584
    %v1603 = vsel %vm1597, %v1590, 920167782
    %v1604 = vsel %vm1596, %v1587, %v1603
    %v1605 = vsel %vm1595, %v1602, %v1604
    %v1606 = vsel %vm1594, %v1584, %v1587
    %v1607 = vsel %vm1597, %v1593, 1326507024
    %v1608 = vsel %vm1596, %v1590, %v1607
    %v1609 = vsel %vm1595, %v1606, %v1608
    %v1610 = vshll.u32 %v1570, 8
    %v1611 = vmul.u32.u64.compose %v1610, %v1609
    %v1612 = vextract.low.u32 %v1611
    %v1613 = vextract.high.u32 %v1611
    %v1614 = vmul.u32.u64.compose %v1610, %v1605
    %v1615 = vextract.low.u32 %v1614
    %v1616 = vextract.high.u32 %v1614
    %v1617 = vmul.u32 %v1610, %v1601
    %v1618 = vadd.s32 %v1613, %v1615
    %vm1619 = vc.u32 %v1613, %v1615
    %v1620 = vadd.s32 %v1616, 1
    %v1621 = vsel %vm1619, %v1620, %v1616
    %v1622 = vadd.s32 %v1617, %v1621
    %v1623 = vadd.s32 %v1622, 536870912
    %v1624 = vshrl.u32 %v1623, 30
    %v1625 = vshll.u32 %v1624, 30
    %v1626 = vsub.s32 %v1622, %v1625
    %vm1627 = vcmp.lt.s32.totalorder %v1626, 0
    %v1628 = vsub.s32 0, %v1626
    %v1629 = vsel %vm1627, %v1628, %v1626
    %v1630 = vclz %v1629
    %v1631 = vsub.s32 %v1630, 2
    %vm1632 = vcmp.gt.s32.totalorder 0, %v1631
    %v1633 = vsel %vm1632, 0, %v1631
    %v1634 = vsub.s32 32, %v1633
    %v1635 = vshll.u32 %v1626, %v1633
    %v1636 = vshrl.u32 %v1618, %v1634
    %v1637 = vor.u32 %v1635, %v1636
    %v1638 = vsub.s32 4294967266, %v1633
    %v1639 = vadd.s32 %v1638, 127
    %v1640 = vshll.u32 %v1639, 23
    %v1641 = vor.u32 4788187, %v1640
    %v1642 = vand.u32 2147483647, %v1641
    %v1644 = vcvt.s32.f32 %v1637
    %v1645 = vmul.f32 %v1644, %v1642
    %v1646 = vxor.u32 %v1645, 2147483648
    %v1647 = vsel %vm1564, %v1646, %v1645
    %v1648 = vsub.s32 4, %v1624
    %v1649 = vsel %vm1564, %v1648, %v1624
    %v1650 = vsel %vm1563, %v413, %v1647
    %v1651 = vsel %vm1563, 0, %v1649
    %v1652 = vcosq.f32.pop %v1650
    %v1653 = vsinq.f32.pop %v1650
    %vm1654 = vweird.f32 %v413
    %v1655 = vadd.s32 %v1651, 3
    %v1656 = vand.u32 %v1655, 3
    %vm1657 = vcmp.lt.s32.totalorder %v1656, 2
    %vm1658 = vcmp.eq.s32.totalorder %v1656, 0
    %v1659 = vxor.u32 %v1653, 2147483648
    %v1660 = vsel %vm1658, %v1652, %v1659
    %vm1661 = vcmp.eq.s32.totalorder %v1656, 2
    %v1662 = vxor.u32 %v1652, 2147483648
    %v1663 = vsel %vm1661, %v1662, %v1653
    %v1664 = vsel %vm1657, %v1660, %v1663
    %v1665 = vsel %vm1654, nan, %v1664
    %v1666 = vand.u32 2147483647, %v414
    %vm1667 = vcmp.le.f32.partialorder %v1666, 0.7853982
    %vm1668 = vcmp.lt.s32.totalorder %v414, 0
    %v1669 = vand.u32 %v414, 2139095040
    %v1670 = vshrl.u32 %v1669, 23
    %v1671 = vsub.s32 %v1670, 127
    %v1672 = vand.u32 2147483647, %v414
    %v1673 = vand.u32 %v1672, 8388607
    %v1674 = vor.u32 %v1673, 8388608
    %v1675 = vsub.s32 0, %v1674
    %v1676 = vadd.s32 %v1671, 1
    %vm1677 = vcmp.gt.s32.totalorder %v1676, 0
    %v1678 = vsel %vm1677, %v1676, 0
    %v1679 = vshrl.u32 %v1678, 5
    %v1680 = vand.u32 %v1678, 31
    %v1681 = vsub.s32 32, %v1680
    %v1682 = vshrl.u32 683565275, %v1681
    %v1683 = vshll.u32 683565275, %v1680
    %v1684 = vshrl.u32 2475754826, %v1681
    %v1685 = vor.u32 %v1683, %v1684
    %v1686 = vshll.u32 2475754826, %v1680
    %v1687 = vshrl.u32 2131351028, %v1681
    %v1688 = vor.u32 %v1686, %v1687
    %v1689 = vshll.u32 2131351028, %v1680
    %v1690 = vshrl.u32 2102212464, %v1681
    %v1691 = vor.u32 %v1689, %v1690
    %v1692 = vshll.u32 2102212464, %v1680
    %v1693 = vshrl.u32 920167782, %v1681
    %v1694 = vor.u32 %v1692, %v1693
    %v1695 = vshll.u32 920167782, %v1680
    %v1696 = vshrl.u32 1326507024, %v1681
    %v1697 = vor.u32 %v1695, %v1696
    %vm1698 = vcmp.lt.s32.totalorder %v1679, 1
    %vm1699 = vcmp.lt.s32.totalorder %v1679, 2
    %vm1700 = vcmp.lt.s32.totalorder %v1679, 3
    %vm1701 = vcmp.lt.s32.totalorder %v1679, 4
    %v1702 = vsel %vm1698, %v1682, %v1685
    %v1703 = vsel %vm1701, %v1691, 2102212464
    %v1704 = vsel %vm1700, %v1688, %v1703
    %v1705 = vsel %vm1699, %v1702, %v1704
    %v1706 = vsel %vm1698, %v1685, %v1688
    %v1707 = vsel %vm1701, %v1694, 920167782
    %v1708 = vsel %vm1700, %v1691, %v1707
    %v1709 = vsel %vm1699, %v1706, %v1708
    %v1710 = vsel %vm1698, %v1688, %v1691
    %v1711 = vsel %vm1701, %v1697, 1326507024
    %v1712 = vsel %vm1700, %v1694, %v1711
    %v1713 = vsel %vm1699, %v1710, %v1712
    %v1714 = vshll.u32 %v1674, 8
    %v1715 = vmul.u32.u64.compose %v1714, %v1713
    %v1716 = vextract.low.u32 %v1715
    %v1717 = vextract.high.u32 %v1715
    %v1718 = vmul.u32.u64.compose %v1714, %v1709
    %v1719 = vextract.low.u32 %v1718
    %v1720 = vextract.high.u32 %v1718
    %v1721 = vmul.u32 %v1714, %v1705
    %v1722 = vadd.s32 %v1717, %v1719
    %vm1723 = vc.u32 %v1717, %v1719
    %v1724 = vadd.s32 %v1720, 1
    %v1725 = vsel %vm1723, %v1724, %v1720
    %v1726 = vadd.s32 %v1721, %v1725
    %v1727 = vadd.s32 %v1726, 536870912
    %v1728 = vshrl.u32 %v1727, 30
    %v1729 = vshll.u32 %v1728, 30
    %v1730 = vsub.s32 %v1726, %v1729
    %vm1731 = vcmp.lt.s32.totalorder %v1730, 0
    %v1732 = vsub.s32 0, %v1730
    %v1733 = vsel %vm1731, %v1732, %v1730
    %v1734 = vclz %v1733
    %v1735 = vsub.s32 %v1734, 2
    %vm1736 = vcmp.gt.s32.totalorder 0, %v1735
    %v1737 = vsel %vm1736, 0, %v1735
    %v1738 = vsub.s32 32, %v1737
    %v1739 = vshll.u32 %v1730, %v1737
    %v1740 = vshrl.u32 %v1722, %v1738
    %v1741 = vor.u32 %v1739, %v1740
    %v1742 = vsub.s32 4294967266, %v1737
    %v1743 = vadd.s32 %v1742, 127
    %v1744 = vshll.u32 %v1743, 23
    %v1745 = vor.u32 4788187, %v1744
    %v1746 = vand.u32 2147483647, %v1745
    %v1748 = vcvt.s32.f32 %v1741
    %v1749 = vmul.f32 %v1748, %v1746
    %v1750 = vxor.u32 %v1749, 2147483648
    %v1751 = vsel %vm1668, %v1750, %v1749
    %v1752 = vsub.s32 4, %v1728
    %v1753 = vsel %vm1668, %v1752, %v1728
    %v1754 = vsel %vm1667, %v414, %v1751
    %v1755 = vsel %vm1667, 0, %v1753
    %v1756 = vcosq.f32.pop %v1754
    %v1757 = vsinq.f32.pop %v1754
    %vm1758 = vweird.f32 %v414
    %v1759 = vadd.s32 %v1755, 3
    %v1760 = vand.u32 %v1759, 3
    %vm1761 = vcmp.lt.s32.totalorder %v1760, 2
    %vm1762 = vcmp.eq.s32.totalorder %v1760, 0
    %v1763 = vxor.u32 %v1757, 2147483648
    %v1764 = vsel %vm1762, %v1756, %v1763
    %vm1765 = vcmp.eq.s32.totalorder %v1760, 2
    %v1766 = vxor.u32 %v1756, 2147483648
    %v1767 = vsel %vm1765, %v1766, %v1757
    %v1768 = vsel %vm1761, %v1764, %v1767
    %v1769 = vsel %vm1758, nan, %v1768
    %v1770 = vand.u32 2147483647, %v415
    %vm1771 = vcmp.le.f32.partialorder %v1770, 0.7853982
    %vm1772 = vcmp.lt.s32.totalorder %v415, 0
    %v1773 = vand.u32 %v415, 2139095040
    %v1774 = vshrl.u32 %v1773, 23
    %v1775 = vsub.s32 %v1774, 127
    %v1776 = vand.u32 2147483647, %v415
    %v1777 = vand.u32 %v1776, 8388607
    %v1778 = vor.u32 %v1777, 8388608
    %v1779 = vsub.s32 0, %v1778
    %v1780 = vadd.s32 %v1775, 1
    %vm1781 = vcmp.gt.s32.totalorder %v1780, 0
    %v1782 = vsel %vm1781, %v1780, 0
    %v1783 = vshrl.u32 %v1782, 5
    %v1784 = vand.u32 %v1782, 31
    %v1785 = vsub.s32 32, %v1784
    %v1786 = vshrl.u32 683565275, %v1785
    %v1787 = vshll.u32 683565275, %v1784
    %v1788 = vshrl.u32 2475754826, %v1785
    %v1789 = vor.u32 %v1787, %v1788
    %v1790 = vshll.u32 2475754826, %v1784
    %v1791 = vshrl.u32 2131351028, %v1785
    %v1792 = vor.u32 %v1790, %v1791
    %v1793 = vshll.u32 2131351028, %v1784
    %v1794 = vshrl.u32 2102212464, %v1785
    %v1795 = vor.u32 %v1793, %v1794
    %v1796 = vshll.u32 2102212464, %v1784
    %v1797 = vshrl.u32 920167782, %v1785
    %v1798 = vor.u32 %v1796, %v1797
    %v1799 = vshll.u32 920167782, %v1784
    %v1800 = vshrl.u32 1326507024, %v1785
    %v1801 = vor.u32 %v1799, %v1800
    %vm1802 = vcmp.lt.s32.totalorder %v1783, 1
    %vm1803 = vcmp.lt.s32.totalorder %v1783, 2
    %vm1804 = vcmp.lt.s32.totalorder %v1783, 3
    %vm1805 = vcmp.lt.s32.totalorder %v1783, 4
    %v1806 = vsel %vm1802, %v1786, %v1789
    %v1807 = vsel %vm1805, %v1795, 2102212464
    %v1808 = vsel %vm1804, %v1792, %v1807
    %v1809 = vsel %vm1803, %v1806, %v1808
    %v1810 = vsel %vm1802, %v1789, %v1792
    %v1811 = vsel %vm1805, %v1798, 920167782
    %v1812 = vsel %vm1804, %v1795, %v1811
    %v1813 = vsel %vm1803, %v1810, %v1812
    %v1814 = vsel %vm1802, %v1792, %v1795
    %v1815 = vsel %vm1805, %v1801, 1326507024
    %v1816 = vsel %vm1804, %v1798, %v1815
    %v1817 = vsel %vm1803, %v1814, %v1816
    %v1818 = vshll.u32 %v1778, 8
    %v1819 = vmul.u32.u64.compose %v1818, %v1817
    %v1820 = vextract.low.u32 %v1819
    %v1821 = vextract.high.u32 %v1819
    %v1822 = vmul.u32.u64.compose %v1818, %v1813
    %v1823 = vextract.low.u32 %v1822
    %v1824 = vextract.high.u32 %v1822
    %v1825 = vmul.u32 %v1818, %v1809
    %v1826 = vadd.s32 %v1821, %v1823
    %vm1827 = vc.u32 %v1821, %v1823
    %v1828 = vadd.s32 %v1824, 1
    %v1829 = vsel %vm1827, %v1828, %v1824
    %v1830 = vadd.s32 %v1825, %v1829
    %v1831 = vadd.s32 %v1830, 536870912
    %v1832 = vshrl.u32 %v1831, 30
    %v1833 = vshll.u32 %v1832, 30
    %v1834 = vsub.s32 %v1830, %v1833
    %vm1835 = vcmp.lt.s32.totalorder %v1834, 0
    %v1836 = vsub.s32 0, %v1834
    %v1837 = vsel %vm1835, %v1836, %v1834
    %v1838 = vclz %v1837
    %v1839 = vsub.s32 %v1838, 2
    %vm1840 = vcmp.gt.s32.totalorder 0, %v1839
    %v1841 = vsel %vm1840, 0, %v1839
    %v1842 = vsub.s32 32, %v1841
    %v1843 = vshll.u32 %v1834, %v1841
    %v1844 = vshrl.u32 %v1826, %v1842
    %v1845 = vor.u32 %v1843, %v1844
    %v1846 = vsub.s32 4294967266, %v1841
    %v1847 = vadd.s32 %v1846, 127
    %v1848 = vshll.u32 %v1847, 23
    %v1849 = vor.u32 4788187, %v1848
    %v1850 = vand.u32 2147483647, %v1849
    %v1852 = vcvt.s32.f32 %v1845
    %v1853 = vmul.f32 %v1852, %v1850
    %v1854 = vxor.u32 %v1853, 2147483648
    %v1855 = vsel %vm1772, %v1854, %v1853
    %v1856 = vsub.s32 4, %v1832
    %v1857 = vsel %vm1772, %v1856, %v1832
    %v1858 = vsel %vm1771, %v415, %v1855
    %v1859 = vsel %vm1771, 0, %v1857
    %v1860 = vcosq.f32.pop %v1858
    %v1861 = vsinq.f32.pop %v1858
    %vm1862 = vweird.f32 %v415
    %v1863 = vadd.s32 %v1859, 3
    %v1864 = vand.u32 %v1863, 3
    %vm1865 = vcmp.lt.s32.totalorder %v1864, 2
    %vm1866 = vcmp.eq.s32.totalorder %v1864, 0
    %v1867 = vxor.u32 %v1861, 2147483648
    %v1868 = vsel %vm1866, %v1860, %v1867
    %vm1869 = vcmp.eq.s32.totalorder %v1864, 2
    %v1870 = vxor.u32 %v1860, 2147483648
    %v1871 = vsel %vm1869, %v1870, %v1861
    %v1872 = vsel %vm1865, %v1868, %v1871
    %v1873 = vsel %vm1862, nan, %v1872
    %v1874 = vand.u32 2147483647, %v416
    %vm1875 = vcmp.le.f32.partialorder %v1874, 0.7853982
    %vm1876 = vcmp.lt.s32.totalorder %v416, 0
    %v1877 = vand.u32 %v416, 2139095040
    %v1878 = vshrl.u32 %v1877, 23
    %v1879 = vsub.s32 %v1878, 127
    %v1880 = vand.u32 2147483647, %v416
    %v1881 = vand.u32 %v1880, 8388607
    %v1882 = vor.u32 %v1881, 8388608
    %v1883 = vsub.s32 0, %v1882
    %v1884 = vadd.s32 %v1879, 1
    %vm1885 = vcmp.gt.s32.totalorder %v1884, 0
    %v1886 = vsel %vm1885, %v1884, 0
    %v1887 = vshrl.u32 %v1886, 5
    %v1888 = vand.u32 %v1886, 31
    %v1889 = vsub.s32 32, %v1888
    %v1890 = vshrl.u32 683565275, %v1889
    %v1891 = vshll.u32 683565275, %v1888
    %v1892 = vshrl.u32 2475754826, %v1889
    %v1893 = vor.u32 %v1891, %v1892
    %v1894 = vshll.u32 2475754826, %v1888
    %v1895 = vshrl.u32 2131351028, %v1889
    %v1896 = vor.u32 %v1894, %v1895
    %v1897 = vshll.u32 2131351028, %v1888
    %v1898 = vshrl.u32 2102212464, %v1889
    %v1899 = vor.u32 %v1897, %v1898
    %v1900 = vshll.u32 2102212464, %v1888
    %v1901 = vshrl.u32 920167782, %v1889
    %v1902 = vor.u32 %v1900, %v1901
    %v1903 = vshll.u32 920167782, %v1888
    %v1904 = vshrl.u32 1326507024, %v1889
    %v1905 = vor.u32 %v1903, %v1904
    %vm1906 = vcmp.lt.s32.totalorder %v1887, 1
    %vm1907 = vcmp.lt.s32.totalorder %v1887, 2
    %vm1908 = vcmp.lt.s32.totalorder %v1887, 3
    %vm1909 = vcmp.lt.s32.totalorder %v1887, 4
    %v1910 = vsel %vm1906, %v1890, %v1893
    %v1911 = vsel %vm1909, %v1899, 2102212464
    %v1912 = vsel %vm1908, %v1896, %v1911
    %v1913 = vsel %vm1907, %v1910, %v1912
    %v1914 = vsel %vm1906, %v1893, %v1896
    %v1915 = vsel %vm1909, %v1902, 920167782
    %v1916 = vsel %vm1908, %v1899, %v1915
    %v1917 = vsel %vm1907, %v1914, %v1916
    %v1918 = vsel %vm1906, %v1896, %v1899
    %v1919 = vsel %vm1909, %v1905, 1326507024
    %v1920 = vsel %vm1908, %v1902, %v1919
    %v1921 = vsel %vm1907, %v1918, %v1920
    %v1922 = vshll.u32 %v1882, 8
    %v1923 = vmul.u32.u64.compose %v1922, %v1921
    %v1924 = vextract.low.u32 %v1923
    %v1925 = vextract.high.u32 %v1923
    %v1926 = vmul.u32.u64.compose %v1922, %v1917
    %v1927 = vextract.low.u32 %v1926
    %v1928 = vextract.high.u32 %v1926
    %v1929 = vmul.u32 %v1922, %v1913
    %v1930 = vadd.s32 %v1925, %v1927
    %vm1931 = vc.u32 %v1925, %v1927
    %v1932 = vadd.s32 %v1928, 1
    %v1933 = vsel %vm1931, %v1932, %v1928
    %v1934 = vadd.s32 %v1929, %v1933
    %v1935 = vadd.s32 %v1934, 536870912
    %v1936 = vshrl.u32 %v1935, 30
    %v1937 = vshll.u32 %v1936, 30
    %v1938 = vsub.s32 %v1934, %v1937
    %vm1939 = vcmp.lt.s32.totalorder %v1938, 0
    %v1940 = vsub.s32 0, %v1938
    %v1941 = vsel %vm1939, %v1940, %v1938
    %v1942 = vclz %v1941
    %v1943 = vsub.s32 %v1942, 2
    %vm1944 = vcmp.gt.s32.totalorder 0, %v1943
    %v1945 = vsel %vm1944, 0, %v1943
    %v1946 = vsub.s32 32, %v1945
    %v1947 = vshll.u32 %v1938, %v1945
    %v1948 = vshrl.u32 %v1930, %v1946
    %v1949 = vor.u32 %v1947, %v1948
    %v1950 = vsub.s32 4294967266, %v1945
    %v1951 = vadd.s32 %v1950, 127
    %v1952 = vshll.u32 %v1951, 23
    %v1953 = vor.u32 4788187, %v1952
    %v1954 = vand.u32 2147483647, %v1953
    %v1956 = vcvt.s32.f32 %v1949
    %v1957 = vmul.f32 %v1956, %v1954
    %v1958 = vxor.u32 %v1957, 2147483648
    %v1959 = vsel %vm1876, %v1958, %v1957
    %v1960 = vsub.s32 4, %v1936
    %v1961 = vsel %vm1876, %v1960, %v1936
    %v1962 = vsel %vm1875, %v416, %v1959
    %v1963 = vsel %vm1875, 0, %v1961
    %v1964 = vcosq.f32.pop %v1962
    %v1965 = vsinq.f32.pop %v1962
    %vm1966 = vweird.f32 %v416
    %v1967 = vadd.s32 %v1963, 3
    %v1968 = vand.u32 %v1967, 3
    %vm1969 = vcmp.lt.s32.totalorder %v1968, 2
    %vm1970 = vcmp.eq.s32.totalorder %v1968, 0
    %v1971 = vxor.u32 %v1965, 2147483648
    %v1972 = vsel %vm1970, %v1964, %v1971
    %vm1973 = vcmp.eq.s32.totalorder %v1968, 2
    %v1974 = vxor.u32 %v1964, 2147483648
    %v1975 = vsel %vm1973, %v1974, %v1965
    %v1976 = vsel %vm1969, %v1972, %v1975
    %v1977 = vsel %vm1966, nan, %v1976
    %v1978 = vand.u32 2147483647, %v417
    %vm1979 = vcmp.le.f32.partialorder %v1978, 0.7853982
    %vm1980 = vcmp.lt.s32.totalorder %v417, 0
    %v1981 = vand.u32 %v417, 2139095040
    %v1982 = vshrl.u32 %v1981, 23
    %v1983 = vsub.s32 %v1982, 127
    %v1984 = vand.u32 2147483647, %v417
    %v1985 = vand.u32 %v1984, 8388607
    %v1986 = vor.u32 %v1985, 8388608
    %v1987 = vsub.s32 0, %v1986
    %v1988 = vadd.s32 %v1983, 1
    %vm1989 = vcmp.gt.s32.totalorder %v1988, 0
    %v1990 = vsel %vm1989, %v1988, 0
    %v1991 = vshrl.u32 %v1990, 5
    %v1992 = vand.u32 %v1990, 31
    %v1993 = vsub.s32 32, %v1992
    %v1994 = vshrl.u32 683565275, %v1993
    %v1995 = vshll.u32 683565275, %v1992
    %v1996 = vshrl.u32 2475754826, %v1993
    %v1997 = vor.u32 %v1995, %v1996
    %v1998 = vshll.u32 2475754826, %v1992
    %v1999 = vshrl.u32 2131351028, %v1993
    %v2000 = vor.u32 %v1998, %v1999
    %v2001 = vshll.u32 2131351028, %v1992
    %v2002 = vshrl.u32 2102212464, %v1993
    %v2003 = vor.u32 %v2001, %v2002
    %v2004 = vshll.u32 2102212464, %v1992
    %v2005 = vshrl.u32 920167782, %v1993
    %v2006 = vor.u32 %v2004, %v2005
    %v2007 = vshll.u32 920167782, %v1992
    %v2008 = vshrl.u32 1326507024, %v1993
    %v2009 = vor.u32 %v2007, %v2008
    %vm2010 = vcmp.lt.s32.totalorder %v1991, 1
    %vm2011 = vcmp.lt.s32.totalorder %v1991, 2
    %vm2012 = vcmp.lt.s32.totalorder %v1991, 3
    %vm2013 = vcmp.lt.s32.totalorder %v1991, 4
    %v2014 = vsel %vm2010, %v1994, %v1997
    %v2015 = vsel %vm2013, %v2003, 2102212464
    %v2016 = vsel %vm2012, %v2000, %v2015
    %v2017 = vsel %vm2011, %v2014, %v2016
    %v2018 = vsel %vm2010, %v1997, %v2000
    %v2019 = vsel %vm2013, %v2006, 920167782
    %v2020 = vsel %vm2012, %v2003, %v2019
    %v2021 = vsel %vm2011, %v2018, %v2020
    %v2022 = vsel %vm2010, %v2000, %v2003
    %v2023 = vsel %vm2013, %v2009, 1326507024
    %v2024 = vsel %vm2012, %v2006, %v2023
    %v2025 = vsel %vm2011, %v2022, %v2024
    %v2026 = vshll.u32 %v1986, 8
    %v2027 = vmul.u32.u64.compose %v2026, %v2025
    %v2028 = vextract.low.u32 %v2027
    %v2029 = vextract.high.u32 %v2027
    %v2030 = vmul.u32.u64.compose %v2026, %v2021
    %v2031 = vextract.low.u32 %v2030
    %v2032 = vextract.high.u32 %v2030
    %v2033 = vmul.u32 %v2026, %v2017
    %v2034 = vadd.s32 %v2029, %v2031
    %vm2035 = vc.u32 %v2029, %v2031
    %v2036 = vadd.s32 %v2032, 1
    %v2037 = vsel %vm2035, %v2036, %v2032
    %v2038 = vadd.s32 %v2033, %v2037
    %v2039 = vadd.s32 %v2038, 536870912
    %v2040 = vshrl.u32 %v2039, 30
    %v2041 = vshll.u32 %v2040, 30
    %v2042 = vsub.s32 %v2038, %v2041
    %vm2043 = vcmp.lt.s32.totalorder %v2042, 0
    %v2044 = vsub.s32 0, %v2042
    %v2045 = vsel %vm2043, %v2044, %v2042
    %v2046 = vclz %v2045
    %v2047 = vsub.s32 %v2046, 2
    %vm2048 = vcmp.gt.s32.totalorder 0, %v2047
    %v2049 = vsel %vm2048, 0, %v2047
    %v2050 = vsub.s32 32, %v2049
    %v2051 = vshll.u32 %v2042, %v2049
    %v2052 = vshrl.u32 %v2034, %v2050
    %v2053 = vor.u32 %v2051, %v2052
    %v2054 = vsub.s32 4294967266, %v2049
    %v2055 = vadd.s32 %v2054, 127
    %v2056 = vshll.u32 %v2055, 23
    %v2057 = vor.u32 4788187, %v2056
    %v2058 = vand.u32 2147483647, %v2057
    %v2060 = vcvt.s32.f32 %v2053
    %v2061 = vmul.f32 %v2060, %v2058
    %v2062 = vxor.u32 %v2061, 2147483648
    %v2063 = vsel %vm1980, %v2062, %v2061
    %v2064 = vsub.s32 4, %v2040
    %v2065 = vsel %vm1980, %v2064, %v2040
    %v2066 = vsel %vm1979, %v417, %v2063
    %v2067 = vsel %vm1979, 0, %v2065
    %v2068 = vcosq.f32.pop %v2066
    %v2069 = vsinq.f32.pop %v2066
    %vm2070 = vweird.f32 %v417
    %v2071 = vadd.s32 %v2067, 3
    %v2072 = vand.u32 %v2071, 3
    %vm2073 = vcmp.lt.s32.totalorder %v2072, 2
    %vm2074 = vcmp.eq.s32.totalorder %v2072, 0
    %v2075 = vxor.u32 %v2069, 2147483648
    %v2076 = vsel %vm2074, %v2068, %v2075
    %vm2077 = vcmp.eq.s32.totalorder %v2072, 2
    %v2078 = vxor.u32 %v2068, 2147483648
    %v2079 = vsel %vm2077, %v2078, %v2069
    %v2080 = vsel %vm2073, %v2076, %v2079
    %v2081 = vsel %vm2070, nan, %v2080
    %v2082 = vmul.f32 %v360, %v1353
    %v2083 = vmul.f32 %v367, %v1457
    %v2084 = vmul.f32 %v374, %v1561
    %v2085 = vmul.f32 %v381, %v1665
    %v2086 = vmul.f32 %v388, %v1769
    %v2087 = vmul.f32 %v395, %v1873
    %v2088 = vmul.f32 %v402, %v1977
    %v2089 = vmul.f32 %v409, %v2081
    %v2098 = vrot.slane %v2082, 4
    %v2099 = vrot.slane %v2083, 4
    %v2100 = vrot.slane %v2084, 4
    %v2101 = vrot.slane %v2085, 4
    %v2102 = vrot.slane %v2086, 4
    %v2103 = vrot.slane %v2087, 4
    %v2104 = vrot.slane %v2088, 4
    %v2105 = vrot.slane %v2089, 4
    %vm2114 = vcmask 1043456
    %v2115 = vsel %vm2114, %v1242, %v2098
    %v2116 = vsel %vm2114, %v1243, %v2099
    %v2117 = vsel %vm2114, %v1244, %v2100
    %v2118 = vsel %vm2114, %v1245, %v2101
    %v2119 = vsel %vm2114, %v1246, %v2102
    %v2120 = vsel %vm2114, %v1247, %v2103
    %v2121 = vsel %vm2114, %v1248, %v2104
    %v2122 = vsel %vm2114, %v1249, %v2105
    %v2123 = vld [vmem:[#allocation3] sm:$0xff]
    %v2124 = vld [vmem:[#allocation3 + $0x8] sm:$0xff]
    %v2125 = vld [vmem:[#allocation3 + $0x10] sm:$0xff]
    %v2126 = vld [vmem:[#allocation3 + $0x18] sm:$0xff]
    %v2127 = vld [vmem:[#allocation3 + $0x20] sm:$0xff]
    %v2128 = vld [vmem:[#allocation3 + $0x28] sm:$0xff]
    %v2129 = vld [vmem:[#allocation3 + $0x30] sm:$0xff]
    %v2130 = vld [vmem:[#allocation3 + $0x38] sm:$0xff]
    %v2131 = vmul.f32 %v2115, 0.1
    %v2132 = vmul.f32 %v2116, 0.1
    %v2133 = vmul.f32 %v2117, 0.1
    %v2134 = vmul.f32 %v2118, 0.1
    %v2135 = vmul.f32 %v2119, 0.1
    %v2136 = vmul.f32 %v2120, 0.1
    %v2137 = vmul.f32 %v2121, 0.1
    %v2138 = vmul.f32 %v2122, 0.1
    %v2139 = vadd.f32 %v2131, 1.0
    %v2140 = vadd.f32 %v2132, 1.0
    %v2141 = vadd.f32 %v2133, 1.0
    %v2142 = vadd.f32 %v2134, 1.0
    %v2143 = vadd.f32 %v2135, 1.0
    %v2144 = vadd.f32 %v2136, 1.0
    %v2145 = vadd.f32 %v2137, 1.0
    %v2146 = vadd.f32 %v2138, 1.0
    %v2147 = vmul.f32 %v2123, %v2139
    %v2148 = vmul.f32 %v2124, %v2140
    %v2149 = vmul.f32 %v2125, %v2141
    %v2150 = vmul.f32 %v2126, %v2142
    %v2151 = vmul.f32 %v2127, %v2143
    %v2152 = vmul.f32 %v2128, %v2144
    %v2153 = vmul.f32 %v2129, %v2145
    %v2154 = vmul.f32 %v2130, %v2146
    %2155 = vst [vmem:[#allocation6] sm:$0xff] %v2147
    %2156 = vst [vmem:[#allocation6 + $0x8] sm:$0xff] %v2148
    %2157 = vst [vmem:[#allocation6 + $0x10] sm:$0xff] %v2149
    %2158 = vst [vmem:[#allocation6 + $0x18] sm:$0xff] %v2150
    %2159 = vst [vmem:[#allocation6 + $0x20] sm:$0xff] %v2151
    %2160 = vst [vmem:[#allocation6 + $0x28] sm:$0xff] %v2152
    %2161 = vst [vmem:[#allocation6 + $0x30] sm:$0xff] %v2153
    %2162 = vst [vmem:[#allocation6 + $0x38] sm:$0xff] %v2154
    // Predicated region
    $region14: #{tpu_custom_call.1} parent=1 // pred_check
      _
    $region15: #{tpu_custom_call.1} parent=1 // pred_check_branch
      %2164 = sbr.rel (0) target = $region17
    $region16: #{tpu_custom_call.1} parent=1 // pred_region
      %s2166 = ssub.s32 1024, 1024
      %2167 = vsyncadd [#allocation5], %s2166
      %s2169 = sshll.u32 [#allocation6], 4
      %s2170 = int_to_ptr.vmem [resolvable:$true] %s2169
      %2172 = dma.vmem_to_hbm [thread:$0]  %s2170, 1024, %s2, [#allocation5]
    $region17: #{tpu_custom_call.1} parent=1 // pred_fallthru
      _
    // Predicated region
    $region18: #{tpu_custom_call.1} parent=1 // pred_check
      _
    $region19: #{tpu_custom_call.1} parent=1 // pred_check_branch
      %2174 = sbr.rel (0) target = $region21
    $region20: #{tpu_custom_call.1} parent=1 // pred_region
      %2175 = dma.done [#allocation5], 1024
    $region21: #{tpu_custom_call.1} parent=1 // pred_fallthru
      _
    %2176 = vsyncpa [#allocation4], 1
    %2177 = vsyncpa [#allocation5], 1

</llo_original>
